<compile_context>
chip_gen: v7x
topology: tpu7x:2x2x1
jax: 0.10.0
libtpu: 0.0.40
codegen_flags: <defaults>
</compile_context>

<pallas_src>
import functools

import jax
import jax.numpy as jnp
from jax.experimental import pallas as pl
from jax.experimental.pallas import tpu as pltpu

_BN_EPS = 1e-5


# --------------------------------------------------------------------------
# Kernel
# --------------------------------------------------------------------------
def _inception_kernel(
    x_ref,                     # (N*H, W*Cin)              rows=(n,h), lanes=(w,ci)
    wf_ref, bf_ref,            # fused 1x1 (block-diag): (2*W*Cin, W*C1), (1, W*C1)
    w3t_ref, b3t_ref,          # 3x3 block-Toeplitz:     (3, W*n3r, W*n3), (1, W*n3)
    w5t_ref, b5t_ref,          # 5x5 block-Toeplitz:     (5, W*n5r, W*n5), (1, W*n5)
    o_ref,                     # (N*H, W*(n1+n3+n5+npp)) branch-major lane blocks
    xp_ref,                    # scratch (N, H+2, (W+2)*Cin)  -inf padded (maxpool)
    rp2_ref,                   # scratch (N, H+2, W*n3r)      zero top/bottom halo
    rp3_ref,                   # scratch (N, H+4, W*n5r)      zero top/bottom halo
    *, N, H, W, cin, n1, n3r, n3, n5r, n5, npp,
):
    f32 = jnp.float32
    NH = N * H
    x = x_ref[...]                                        # (NH, W*cin)

    # ---- branch 4 (front): 3x3 max-pool, stride 1, pad 1 (-inf halo) -------
    xp_ref[...] = jnp.full(xp_ref.shape, -jnp.inf, f32)
    xp_ref[:, 1:1 + H, cin:cin + W * cin] = x.reshape(N, H, W * cin)
    pooled = None
    for dy in range(3):
        for dx in range(3):
            # lane offset dx*cin: the shift goes through the XLU, not vld/vst.
            tap = xp_ref[:, dy:dy + H, dx * cin:dx * cin + W * cin]
            pooled = tap if pooled is None else jnp.maximum(pooled, tap)
    pooled = pooled.reshape(NH, W * cin)

    # ---- all four 1x1 convs fused into ONE block-diagonal MXU matmul -------
    #   LHS = [x | pooled]  ->  [b1 | 3x3-reduce | 5x5-reduce | pool-proj]
    lhs = jnp.concatenate([x, pooled], axis=-1)           # (NH, 2*W*cin)
    y1 = jnp.maximum(
        jnp.dot(lhs, wf_ref[...], preferred_element_type=f32) + bf_ref[...],
        0.0)
    c1 = W * n1
    c2 = c1 + W * n3r
    c3 = c2 + W * n5r
    b1_out = y1[:, :c1]                                   # (NH, W*n1)
    r2 = y1[:, c1:c2]                                     # (NH, W*n3r)
    r3 = y1[:, c2:c3]                                     # (NH, W*n5r)
    b4_out = y1[:, c3:]                                   # (NH, W*npp)

    # ---- branch 2: 3x3 conv (pad 1) = 3 row-shifted block-Toeplitz matmuls -
    # Horizontal zero padding is baked into the Toeplitz bands; vertical
    # padding = zero halo rows.  Halo-only init, lane-aligned full-row stores.
    zrow2 = jnp.zeros((N, 1, W * n3r), f32)
    rp2_ref[:, 0:1, :] = zrow2
    rp2_ref[:, H + 1:H + 2, :] = zrow2
    rp2_ref[:, 1:1 + H, :] = r2.reshape(N, H, W * n3r)
    acc2 = jnp.zeros((NH, W * n3), f32)
    for dy in range(3):
        s = rp2_ref[:, dy:dy + H, :].reshape(NH, W * n3r)
        acc2 = acc2 + jnp.dot(s, w3t_ref[dy], preferred_element_type=f32)
    b2_out = jnp.maximum(acc2 + b3t_ref[...], 0.0)

    # ---- branch 3: 5x5 conv (pad 2) = 5 row-shifted block-Toeplitz matmuls -
    zrow3 = jnp.zeros((N, 2, W * n5r), f32)
    rp3_ref[:, 0:2, :] = zrow3
    rp3_ref[:, H + 2:H + 4, :] = zrow3
    rp3_ref[:, 2:2 + H, :] = r3.reshape(N, H, W * n5r)
    acc3 = jnp.zeros((NH, W * n5), f32)
    for dy in range(5):
        s = rp3_ref[:, dy:dy + H, :].reshape(NH, W * n5r)
        acc3 = acc3 + jnp.dot(s, w5t_ref[dy], preferred_element_type=f32)
    b3_out = jnp.maximum(acc3 + b5t_ref[...], 0.0)

    # ---- single fully lane-dense output store ------------------------------
    o_ref[...] = jnp.concatenate(
        [b1_out, b2_out, b3_out, b4_out], axis=-1).astype(o_ref.dtype)


# --------------------------------------------------------------------------
# Parameter preparation (eval-mode BN folding + packed matmul weights)
# --------------------------------------------------------------------------
def _fold_bn(w, b, gamma, beta, mean, var, eps=_BN_EPS):
    scale = gamma / jnp.sqrt(var + eps)
    return w * scale[:, None, None, None], (b - mean) * scale + beta


def _conv_row_toeplitz(w_oihw, w_sp):
    """(O, I, k, k) 'same'-padded conv weight -> (k, W*I, W*O) banded matrices.

    mats[dy][wi*I + ci, w*O + co] == w_oihw[co, ci, dy, dx] with
    wi = w + dx - (k-1)//2; bands falling outside [0, W) are dropped, which
    implements the horizontal zero padding.  Per output row h:
        out[:, w*O + co] = sum_dy  in_row(h + dy - (k-1)//2) @ mats[dy]
    with zero rows supplying the vertical padding.
    """
    o, i, k, _ = w_oihw.shape
    pad = (k - 1) // 2
    mats = []
    for dy in range(k):
        t = jnp.zeros((w_sp, i, w_sp, o), jnp.float32)
        for dx in range(k):
            band = jnp.eye(w_sp, w_sp, k=pad - dx, dtype=jnp.float32)  # [wi,w]
            t = t + jnp.einsum("pw,io->piwo", band, w_oihw[:, :, dy, dx].T)
        mats.append(t.reshape(w_sp * i, w_sp * o))
    return jnp.stack(mats)                                 # (k, W*I, W*O)


def prepare_kernel_params(params, w_sp):
    """Fold eval-mode BN into the convs and build the packed matmul weights."""
    w1x1_b1, bias_b1 = _fold_bn(*params["b1_conv"], *params["b1_bn"])
    w1x1_b2r, bias_b2r = _fold_bn(*params["b2_conv1"], *params["b2_bn1"])
    w3x3_b2, bias_b2 = _fold_bn(*params["b2_conv2"], *params["b2_bn2"])
    w1x1_b3r, bias_b3r = _fold_bn(*params["b3_conv1"], *params["b3_bn1"])
    w5x5_b3, bias_b3 = _fold_bn(*params["b3_conv2"], *params["b3_bn2"])
    w1x1_b4, bias_b4 = _fold_bn(*params["b4_conv"], *params["b4_bn"])

    cin = w1x1_b1.shape[1]
    n1, n3r, n3 = w1x1_b1.shape[0], w1x1_b2r.shape[0], w3x3_b2.shape[0]
    n5r, n5, npp = w1x1_b3r.shape[0], w5x5_b3.shape[0], w1x1_b4.shape[0]

    # Fused block-diagonal 1x1 weight: LHS lanes = [x(w,ci) | pooled(w,ci)],
    # output lanes = [b1 | 3x3-reduce | 5x5-reduce | pool-proj], each (w, co).
    bd1 = _conv_row_toeplitz(w1x1_b1, w_sp)[0]             # (W*cin, W*n1)
    bd2r = _conv_row_toeplitz(w1x1_b2r, w_sp)[0]           # (W*cin, W*n3r)
    bd3r = _conv_row_toeplitz(w1x1_b3r, w_sp)[0]           # (W*cin, W*n5r)
    bd4 = _conv_row_toeplitz(w1x1_b4, w_sp)[0]             # (W*cin, W*npp)
    top = jnp.concatenate(
        [bd1, bd2r, bd3r, jnp.zeros((w_sp * cin, w_sp * npp), jnp.float32)],
        axis=1)
    bot = jnp.concatenate(
        [jnp.zeros((w_sp * cin, w_sp * (n1 + n3r + n5r)), jnp.float32), bd4],
        axis=1)
    wf = jnp.concatenate([top, bot], axis=0)               # (2*W*cin, W*C1)
    bf = jnp.concatenate([jnp.tile(bias_b1, w_sp), jnp.tile(bias_b2r, w_sp),
                          jnp.tile(bias_b3r, w_sp), jnp.tile(bias_b4, w_sp)]
                         )[None, :]

    w3t = _conv_row_toeplitz(w3x3_b2, w_sp)                # (3, W*n3r, W*n3)
    b3t = jnp.tile(bias_b2, w_sp)[None, :]                 # (1, W*n3)
    w5t = _conv_row_toeplitz(w5x5_b3, w_sp)                # (5, W*n5r, W*n5)
    b5t = jnp.tile(bias_b3, w_sp)[None, :]                 # (1, W*n5)

    dims = dict(cin=cin, n1=n1, n3r=n3r, n3=n3, n5r=n5r, n5=n5, npp=npp)
    return (wf, bf, w3t, b3t, w5t, b5t), dims


# --------------------------------------------------------------------------
# Wrapper
# --------------------------------------------------------------------------
def inception_forward(x_nchw, kparams, dims):
    wf, bf, w3t, b3t, w5t, b5t = kparams
    N, cin, H, W = x_nchw.shape
    n1, n3r, n3 = dims["n1"], dims["n3r"], dims["n3"]
    n5r, n5, npp = dims["n5r"], dims["n5"], dims["npp"]
    ctot = n1 + n3 + n5 + npp
    NH = N * H

    # rows = (n, h); lanes = (w, c)  ->  every operand is >=128-lane dense.
    x2d = jnp.transpose(x_nchw, (0, 2, 3, 1)).reshape(NH, W * cin)

    kernel = functools.partial(
        _inception_kernel, N=N, H=H, W=W, cin=cin,
        n1=n1, n3r=n3r, n3=n3, n5r=n5r, n5=n5, npp=npp)
    vmem = pl.BlockSpec(memory_space=pltpu.MemorySpace.VMEM)

    flops = 2 * NH * ((2 * W * cin) * (W * (n1 + n3r + n5r + npp))
                      + 3 * (W * n3r) * (W * n3)
                      + 5 * (W * n5r) * (W * n5))
    bytes_accessed = 4 * (x2d.size + NH * W * ctot
                          + sum(int(a.size) for a in kparams))

    out2d = pl.pallas_call(
        kernel,
        out_shape=jax.ShapeDtypeStruct((NH, W * ctot), x_nchw.dtype),
        in_specs=[vmem] * 7,
        out_specs=vmem,
        scratch_shapes=[
            pltpu.VMEM((N, H + 2, (W + 2) * cin), jnp.float32),  # pool pad
            pltpu.VMEM((N, H + 2, W * n3r), jnp.float32),        # 3x3 row pad
            pltpu.VMEM((N, H + 4, W * n5r), jnp.float32),        # 5x5 row pad
        ],
        cost_estimate=pl.CostEstimate(
            flops=flops, transcendentals=0, bytes_accessed=bytes_accessed),
    )(x2d, wf, bf, w3t, b3t, w5t, b5t)

    # Split branch-major lane blocks, restore NCHW, concat on channels.
    parts, off = [], 0
    for cb in (n1, n3, n5, npp):
        blk = out2d[:, off:off + W * cb].reshape(N, H, W, cb)
        parts.append(jnp.transpose(blk, (0, 3, 1, 2)))
        off += W * cb
    return jnp.concatenate(parts, axis=1)


# --------------------------------------------------------------------------
# Pure-JAX reference (eval-mode BN), deterministic params, self-check
# --------------------------------------------------------------------------
def init_inception_params(key, in_channels, n1x1, n3x3red, n3x3,
                          n5x5red, n5x5, pool_proj):
    def conv(k, o, i, ksz):
        kw_, kb_ = jax.random.split(k)
        bound = 1.0 / float(i * ksz * ksz) ** 0.5
        w = jax.random.uniform(kw_, (o, i, ksz, ksz), jnp.float32, -bound, bound)
        b = jax.random.uniform(kb_, (o,), jnp.float32, -bound, bound)
        return w, b

    def bn(k, c):
        k1, k2, k3, k4 = jax.random.split(k, 4)
        gamma = jax.random.uniform(k1, (c,), jnp.float32, 0.5, 1.5)
        beta = jax.random.normal(k2, (c,), jnp.float32) * 0.1
        mean = jax.random.normal(k3, (c,), jnp.float32) * 0.1
        var = jax.random.uniform(k4, (c,), jnp.float32, 0.5, 1.5)
        return gamma, beta, mean, var

    ks = jax.random.split(key, 12)
    return {
        "b1_conv": conv(ks[0], n1x1, in_channels, 1),     "b1_bn": bn(ks[1], n1x1),
        "b2_conv1": conv(ks[2], n3x3red, in_channels, 1), "b2_bn1": bn(ks[3], n3x3red),
        "b2_conv2": conv(ks[4], n3x3, n3x3red, 3),        "b2_bn2": bn(ks[5], n3x3),
        "b3_conv1": conv(ks[6], n5x5red, in_channels, 1), "b3_bn1": bn(ks[7], n5x5red),
        "b3_conv2": conv(ks[8], n5x5, n5x5red, 5),        "b3_bn2": bn(ks[9], n5x5),
        "b4_conv": conv(ks[10], pool_proj, in_channels, 1), "b4_bn": bn(ks[11], pool_proj),
    }


def ref_inception_forward(x, params, eps=_BN_EPS):
    hp = jax.lax.Precision.HIGHEST

    def conv(inp, w, b, pad):
        y = jax.lax.conv_general_dilated(
            inp, w, window_strides=(1, 1), padding=[(pad, pad), (pad, pad)],
            dimension_numbers=("NCHW", "OIHW", "NCHW"), precision=hp)
        return y + b[None, :, None, None]

    def bn(inp, gamma, beta, mean, var):
        inv = gamma / jnp.sqrt(var + eps)
        return (inp - mean[None, :, None, None]) * inv[None, :, None, None] \
            + beta[None, :, None, None]

    relu = lambda t: jnp.maximum(t, 0.0)

    b1 = relu(bn(conv(x, *params["b1_conv"], 0), *params["b1_bn"]))
    h2 = relu(bn(conv(x, *params["b2_conv1"], 0), *params["b2_bn1"]))
    b2 = relu(bn(conv(h2, *params["b2_conv2"], 1), *params["b2_bn2"]))
    h3 = relu(bn(conv(x, *params["b3_conv1"], 0), *params["b3_bn1"]))
    b3 = relu(bn(conv(h3, *params["b3_conv2"], 2), *params["b3_bn2"]))
    pooled = jax.lax.reduce_window(
        x, -jnp.inf, jax.lax.max, window_dimensions=(1, 1, 3, 3),
        window_strides=(1, 1, 1, 1), padding=[(0, 0), (0, 0), (1, 1), (1, 1)])
    b4 = relu(bn(conv(pooled, *params["b4_conv"], 0), *params["b4_bn"]))
    return jnp.concatenate([b1, b2, b3, b4], axis=1)


if __name__ == "__main__":
    N, Cin, H, W = 2, 8, 16, 16
    n1x1, n3x3red, n3x3, n5x5red, n5x5, pool_proj = 16, 8, 16, 8, 16, 16

    key = jax.random.PRNGKey(0)
    k_params, k_x = jax.random.split(key)
    params = init_inception_params(k_params, Cin, n1x1, n3x3red, n3x3,
                                   n5x5red, n5x5, pool_proj)
    x = jax.random.normal(k_x, (N, Cin, H, W), jnp.float32)

    kparams, dims = prepare_kernel_params(params, W)
    out = inception_forward(x, kparams, dims)
    jax.block_until_ready(out)

    ref = ref_inception_forward(x, params)
    ok = out.shape == (N, n1x1 + n3x3 + n5x5 + pool_proj, H, W)
    ok = ok and bool(jnp.allclose(out, ref, atol=2e-3, rtol=2e-3))

    if ok:
        print("KERNEL_OK")
    else:
        print("MISMATCH max_abs_err=%g" % float(jnp.max(jnp.abs(out - ref))))
</pallas_src>

<mosaic_0001>
module attributes {stable_mosaic.version = 11 : i64} {
  func.func @_inception_kernel(%arg0: memref<32x128xf32, #tpu.memory_space<vmem>>, %arg1: memref<256x768xf32, #tpu.memory_space<vmem>>, %arg2: memref<1x768xf32, #tpu.memory_space<vmem>>, %arg3: memref<3x128x256xf32, #tpu.memory_space<vmem>>, %arg4: memref<1x256xf32, #tpu.memory_space<vmem>>, %arg5: memref<5x128x256xf32, #tpu.memory_space<vmem>>, %arg6: memref<1x256xf32, #tpu.memory_space<vmem>>, %arg7: memref<32x1024xf32, #tpu.memory_space<vmem>>, %arg8: memref<2x18x144xf32, #tpu.memory_space<vmem>>, %arg9: memref<2x18x128xf32, #tpu.memory_space<vmem>>, %arg10: memref<2x20x128xf32, #tpu.memory_space<vmem>>) attributes {dimension_semantics = [], scalar_prefetch = 0 : i64, scratch_operands = 3 : i64, tpu.core_type = #tpu.core_type<tc>} {
    %c0 = arith.constant 0 : index
    %c0_0 = arith.constant 0 : index
    %0 = vector.load %arg0[%c0, %c0_0] : memref<32x128xf32, #tpu.memory_space<vmem>>, vector<32x128xf32>
    %cst = arith.constant 0xFF800000 : f32
    %1 = vector.broadcast %cst : f32 to vector<2x18x144xf32>
    %c0_1 = arith.constant 0 : index
    %c0_2 = arith.constant 0 : index
    %c0_3 = arith.constant 0 : index
    %2 = vector.load %arg8[%c0_1, %c0_2, %c0_3] : memref<2x18x144xf32, #tpu.memory_space<vmem>>, vector<2x18x144xf32>
    tpu.vector_store %arg8[%c0_1, %c0_2, %c0_3], %1 {strides = array<i32>} : memref<2x18x144xf32, #tpu.memory_space<vmem>>, vector<2x18x144xf32>,
    %3 = vector.shape_cast %0 : vector<32x128xf32> to vector<2x16x128xf32>
    %c0_4 = arith.constant 0 : index
    %c1 = arith.constant 1 : index
    %c8 = arith.constant 8 : index
    %4 = vector.load %arg8[%c0_4, %c1, %c8] : memref<2x18x144xf32, #tpu.memory_space<vmem>>, vector<2x16x128xf32>
    tpu.vector_store %arg8[%c0_4, %c1, %c8], %3 {strides = array<i32>} : memref<2x18x144xf32, #tpu.memory_space<vmem>>, vector<2x16x128xf32>,
    %c0_5 = arith.constant 0 : index
    %c0_6 = arith.constant 0 : index
    %c0_7 = arith.constant 0 : index
    %5 = vector.load %arg8[%c0_5, %c0_6, %c0_7] : memref<2x18x144xf32, #tpu.memory_space<vmem>>, vector<2x16x128xf32>
    %c0_8 = arith.constant 0 : index
    %c0_9 = arith.constant 0 : index
    %c8_10 = arith.constant 8 : index
    %6 = vector.load %arg8[%c0_8, %c0_9, %c8_10] : memref<2x18x144xf32, #tpu.memory_space<vmem>>, vector<2x16x128xf32>
    %7 = arith.maximumf %5, %6 : vector<2x16x128xf32>
    %c0_11 = arith.constant 0 : index
    %c0_12 = arith.constant 0 : index
    %c16 = arith.constant 16 : index
    %8 = vector.load %arg8[%c0_11, %c0_12, %c16] : memref<2x18x144xf32, #tpu.memory_space<vmem>>, vector<2x16x128xf32>
    %9 = arith.maximumf %7, %8 : vector<2x16x128xf32>
    %c0_13 = arith.constant 0 : index
    %c1_14 = arith.constant 1 : index
    %c0_15 = arith.constant 0 : index
    %10 = vector.load %arg8[%c0_13, %c1_14, %c0_15] : memref<2x18x144xf32, #tpu.memory_space<vmem>>, vector<2x16x128xf32>
    %11 = arith.maximumf %9, %10 : vector<2x16x128xf32>
    %c0_16 = arith.constant 0 : index
    %c1_17 = arith.constant 1 : index
    %c8_18 = arith.constant 8 : index
    %12 = vector.load %arg8[%c0_16, %c1_17, %c8_18] : memref<2x18x144xf32, #tpu.memory_space<vmem>>, vector<2x16x128xf32>
    %13 = arith.maximumf %11, %12 : vector<2x16x128xf32>
    %c0_19 = arith.constant 0 : index
    %c1_20 = arith.constant 1 : index
    %c16_21 = arith.constant 16 : index
    %14 = vector.load %arg8[%c0_19, %c1_20, %c16_21] : memref<2x18x144xf32, #tpu.memory_space<vmem>>, vector<2x16x128xf32>
    %15 = arith.maximumf %13, %14 : vector<2x16x128xf32>
    %c0_22 = arith.constant 0 : index
    %c2 = arith.constant 2 : index
    %c0_23 = arith.constant 0 : index
    %16 = vector.load %arg8[%c0_22, %c2, %c0_23] : memref<2x18x144xf32, #tpu.memory_space<vmem>>, vector<2x16x128xf32>
    %17 = arith.maximumf %15, %16 : vector<2x16x128xf32>
    %c0_24 = arith.constant 0 : index
    %c2_25 = arith.constant 2 : index
    %c8_26 = arith.constant 8 : index
    %18 = vector.load %arg8[%c0_24, %c2_25, %c8_26] : memref<2x18x144xf32, #tpu.memory_space<vmem>>, vector<2x16x128xf32>
    %19 = arith.maximumf %17, %18 : vector<2x16x128xf32>
    %c0_27 = arith.constant 0 : index
    %c2_28 = arith.constant 2 : index
    %c16_29 = arith.constant 16 : index
    %20 = vector.load %arg8[%c0_27, %c2_28, %c16_29] : memref<2x18x144xf32, #tpu.memory_space<vmem>>, vector<2x16x128xf32>
    %21 = arith.maximumf %19, %20 : vector<2x16x128xf32>
    %22 = vector.shape_cast %21 : vector<2x16x128xf32> to vector<32x128xf32>
    %23 = tpu.concatenate %0, %22 in 1 : vector<32x128xf32>, vector<32x128xf32> -> vector<32x256xf32>
    %c0_30 = arith.constant 0 : index
    %c0_31 = arith.constant 0 : index
    %24 = vector.load %arg1[%c0_30, %c0_31] : memref<256x768xf32, #tpu.memory_space<vmem>>, vector<256x768xf32>
    %cst_32 = arith.constant dense<0.000000e+00> : vector<32x768xf32>
    %25 = tpu.matmul %23, %24, %cst_32 {dimension_numbers = #tpu.dot_dimension_numbers<[1], [0], [0], [1], [0, 0, 1, 1], [], []>} : vector<32x256xf32>, vector<256x768xf32>, vector<32x768xf32> -> vector<32x768xf32>
    %c0_33 = arith.constant 0 : index
    %c0_34 = arith.constant 0 : index
    %26 = vector.load %arg2[%c0_33, %c0_34] : memref<1x768xf32, #tpu.memory_space<vmem>>, vector<1x768xf32>
    %27 = vector.broadcast %26 : vector<1x768xf32> to vector<32x768xf32>
    %28 = arith.addf %25, %27 : vector<32x768xf32>
    %cst_35 = arith.constant 0.000000e+00 : f32
    %29 = vector.broadcast %cst_35 : f32 to vector<32x768xf32>
    %30 = arith.maximumf %28, %29 : vector<32x768xf32>
    %31 = vector.extract_strided_slice %30 {offsets = [0, 0], sizes = [32, 256], strides = [1, 1]} : vector<32x768xf32> to vector<32x256xf32>
    %32 = vector.extract_strided_slice %30 {offsets = [0, 256], sizes = [32, 128], strides = [1, 1]} : vector<32x768xf32> to vector<32x128xf32>
    %33 = vector.extract_strided_slice %30 {offsets = [0, 384], sizes = [32, 128], strides = [1, 1]} : vector<32x768xf32> to vector<32x128xf32>
    %34 = vector.extract_strided_slice %30 {offsets = [0, 512], sizes = [32, 256], strides = [1, 1]} : vector<32x768xf32> to vector<32x256xf32>
    %cst_36 = arith.constant 0.000000e+00 : f32
    %35 = vector.broadcast %cst_36 : f32 to vector<2x1x128xf32>
    %c0_37 = arith.constant 0 : index
    %c0_38 = arith.constant 0 : index
    %c0_39 = arith.constant 0 : index
    %36 = vector.load %arg9[%c0_37, %c0_38, %c0_39] : memref<2x18x128xf32, #tpu.memory_space<vmem>>, vector<2x1x128xf32>
    tpu.vector_store %arg9[%c0_37, %c0_38, %c0_39], %35 {strides = array<i32>} : memref<2x18x128xf32, #tpu.memory_space<vmem>>, vector<2x1x128xf32>,
    %c0_40 = arith.constant 0 : index
    %c17 = arith.constant 17 : index
    %c0_41 = arith.constant 0 : index
    %37 = vector.load %arg9[%c0_40, %c17, %c0_41] : memref<2x18x128xf32, #tpu.memory_space<vmem>>, vector<2x1x128xf32>
    tpu.vector_store %arg9[%c0_40, %c17, %c0_41], %35 {strides = array<i32>} : memref<2x18x128xf32, #tpu.memory_space<vmem>>, vector<2x1x128xf32>,
    %38 = vector.shape_cast %32 : vector<32x128xf32> to vector<2x16x128xf32>
    %c0_42 = arith.constant 0 : index
    %c1_43 = arith.constant 1 : index
    %c0_44 = arith.constant 0 : index
    %39 = vector.load %arg9[%c0_42, %c1_43, %c0_44] : memref<2x18x128xf32, #tpu.memory_space<vmem>>, vector<2x16x128xf32>
    tpu.vector_store %arg9[%c0_42, %c1_43, %c0_44], %38 {strides = array<i32>} : memref<2x18x128xf32, #tpu.memory_space<vmem>>, vector<2x16x128xf32>,
    %cst_45 = arith.constant 0.000000e+00 : f32
    %40 = vector.broadcast %cst_45 : f32 to vector<32x256xf32>
    %c0_46 = arith.constant 0 : index
    %c0_47 = arith.constant 0 : index
    %c0_48 = arith.constant 0 : index
    %41 = vector.load %arg9[%c0_46, %c0_47, %c0_48] : memref<2x18x128xf32, #tpu.memory_space<vmem>>, vector<2x16x128xf32>
    %42 = vector.shape_cast %41 : vector<2x16x128xf32> to vector<32x128xf32>
    %c0_49 = arith.constant 0 : index
    %c0_50 = arith.constant 0 : index
    %c0_51 = arith.constant 0 : index
    %43 = vector.load %arg3[%c0_49, %c0_50, %c0_51] : memref<3x128x256xf32, #tpu.memory_space<vmem>>, vector<1x128x256xf32>
    %44 = vector.shape_cast %43 : vector<1x128x256xf32> to vector<128x256xf32>
    %cst_52 = arith.constant dense<0.000000e+00> : vector<32x256xf32>
    %45 = tpu.matmul %42, %44, %cst_52 {dimension_numbers = #tpu.dot_dimension_numbers<[1], [0], [0], [1], [0, 0, 1, 1], [], []>} : vector<32x128xf32>, vector<128x256xf32>, vector<32x256xf32> -> vector<32x256xf32>
    %46 = arith.addf %40, %45 : vector<32x256xf32>
    %c0_53 = arith.constant 0 : index
    %c1_54 = arith.constant 1 : index
    %c0_55 = arith.constant 0 : index
    %47 = vector.load %arg9[%c0_53, %c1_54, %c0_55] : memref<2x18x128xf32, #tpu.memory_space<vmem>>, vector<2x16x128xf32>
    %48 = vector.shape_cast %47 : vector<2x16x128xf32> to vector<32x128xf32>
    %c1_56 = arith.constant 1 : index
    %c0_57 = arith.constant 0 : index
    %c0_58 = arith.constant 0 : index
    %49 = vector.load %arg3[%c1_56, %c0_57, %c0_58] : memref<3x128x256xf32, #tpu.memory_space<vmem>>, vector<1x128x256xf32>
    %50 = vector.shape_cast %49 : vector<1x128x256xf32> to vector<128x256xf32>
    %cst_59 = arith.constant dense<0.000000e+00> : vector<32x256xf32>
    %51 = tpu.matmul %48, %50, %cst_59 {dimension_numbers = #tpu.dot_dimension_numbers<[1], [0], [0], [1], [0, 0, 1, 1], [], []>} : vector<32x128xf32>, vector<128x256xf32>, vector<32x256xf32> -> vector<32x256xf32>
    %52 = arith.addf %46, %51 : vector<32x256xf32>
    %c0_60 = arith.constant 0 : index
    %c2_61 = arith.constant 2 : index
    %c0_62 = arith.constant 0 : index
    %53 = vector.load %arg9[%c0_60, %c2_61, %c0_62] : memref<2x18x128xf32, #tpu.memory_space<vmem>>, vector<2x16x128xf32>
    %54 = vector.shape_cast %53 : vector<2x16x128xf32> to vector<32x128xf32>
    %c2_63 = arith.constant 2 : index
    %c0_64 = arith.constant 0 : index
    %c0_65 = arith.constant 0 : index
    %55 = vector.load %arg3[%c2_63, %c0_64, %c0_65] : memref<3x128x256xf32, #tpu.memory_space<vmem>>, vector<1x128x256xf32>
    %56 = vector.shape_cast %55 : vector<1x128x256xf32> to vector<128x256xf32>
    %cst_66 = arith.constant dense<0.000000e+00> : vector<32x256xf32>
    %57 = tpu.matmul %54, %56, %cst_66 {dimension_numbers = #tpu.dot_dimension_numbers<[1], [0], [0], [1], [0, 0, 1, 1], [], []>} : vector<32x128xf32>, vector<128x256xf32>, vector<32x256xf32> -> vector<32x256xf32>
    %58 = arith.addf %52, %57 : vector<32x256xf32>
    %c0_67 = arith.constant 0 : index
    %c0_68 = arith.constant 0 : index
    %59 = vector.load %arg4[%c0_67, %c0_68] : memref<1x256xf32, #tpu.memory_space<vmem>>, vector<1x256xf32>
    %60 = vector.broadcast %59 : vector<1x256xf32> to vector<32x256xf32>
    %61 = arith.addf %58, %60 : vector<32x256xf32>
    %cst_69 = arith.constant 0.000000e+00 : f32
    %62 = vector.broadcast %cst_69 : f32 to vector<32x256xf32>
    %63 = arith.maximumf %61, %62 : vector<32x256xf32>
    %cst_70 = arith.constant 0.000000e+00 : f32
    %64 = vector.broadcast %cst_70 : f32 to vector<2x2x128xf32>
    %c0_71 = arith.constant 0 : index
    %c0_72 = arith.constant 0 : index
    %c0_73 = arith.constant 0 : index
    %65 = vector.load %arg10[%c0_71, %c0_72, %c0_73] : memref<2x20x128xf32, #tpu.memory_space<vmem>>, vector<2x2x128xf32>
    tpu.vector_store %arg10[%c0_71, %c0_72, %c0_73], %64 {strides = array<i32>} : memref<2x20x128xf32, #tpu.memory_space<vmem>>, vector<2x2x128xf32>,
    %c0_74 = arith.constant 0 : index
    %c18 = arith.constant 18 : index
    %c0_75 = arith.constant 0 : index
    %66 = vector.load %arg10[%c0_74, %c18, %c0_75] : memref<2x20x128xf32, #tpu.memory_space<vmem>>, vector<2x2x128xf32>
    tpu.vector_store %arg10[%c0_74, %c18, %c0_75], %64 {strides = array<i32>} : memref<2x20x128xf32, #tpu.memory_space<vmem>>, vector<2x2x128xf32>,
    %67 = vector.shape_cast %33 : vector<32x128xf32> to vector<2x16x128xf32>
    %c0_76 = arith.constant 0 : index
    %c2_77 = arith.constant 2 : index
    %c0_78 = arith.constant 0 : index
    %68 = vector.load %arg10[%c0_76, %c2_77, %c0_78] : memref<2x20x128xf32, #tpu.memory_space<vmem>>, vector<2x16x128xf32>
    tpu.vector_store %arg10[%c0_76, %c2_77, %c0_78], %67 {strides = array<i32>} : memref<2x20x128xf32, #tpu.memory_space<vmem>>, vector<2x16x128xf32>,
    %cst_79 = arith.constant 0.000000e+00 : f32
    %69 = vector.broadcast %cst_79 : f32 to vector<32x256xf32>
    %c0_80 = arith.constant 0 : index
    %c0_81 = arith.constant 0 : index
    %c0_82 = arith.constant 0 : index
    %70 = vector.load %arg10[%c0_80, %c0_81, %c0_82] : memref<2x20x128xf32, #tpu.memory_space<vmem>>, vector<2x16x128xf32>
    %71 = vector.shape_cast %70 : vector<2x16x128xf32> to vector<32x128xf32>
    %c0_83 = arith.constant 0 : index
    %c0_84 = arith.constant 0 : index
    %c0_85 = arith.constant 0 : index
    %72 = vector.load %arg5[%c0_83, %c0_84, %c0_85] : memref<5x128x256xf32, #tpu.memory_space<vmem>>, vector<1x128x256xf32>
    %73 = vector.shape_cast %72 : vector<1x128x256xf32> to vector<128x256xf32>
    %cst_86 = arith.constant dense<0.000000e+00> : vector<32x256xf32>
    %74 = tpu.matmul %71, %73, %cst_86 {dimension_numbers = #tpu.dot_dimension_numbers<[1], [0], [0], [1], [0, 0, 1, 1], [], []>} : vector<32x128xf32>, vector<128x256xf32>, vector<32x256xf32> -> vector<32x256xf32>
    %75 = arith.addf %69, %74 : vector<32x256xf32>
    %c0_87 = arith.constant 0 : index
    %c1_88 = arith.constant 1 : index
    %c0_89 = arith.constant 0 : index
    %76 = vector.load %arg10[%c0_87, %c1_88, %c0_89] : memref<2x20x128xf32, #tpu.memory_space<vmem>>, vector<2x16x128xf32>
    %77 = vector.shape_cast %76 : vector<2x16x128xf32> to vector<32x128xf32>
    %c1_90 = arith.constant 1 : index
    %c0_91 = arith.constant 0 : index
    %c0_92 = arith.constant 0 : index
    %78 = vector.load %arg5[%c1_90, %c0_91, %c0_92] : memref<5x128x256xf32, #tpu.memory_space<vmem>>, vector<1x128x256xf32>
    %79 = vector.shape_cast %78 : vector<1x128x256xf32> to vector<128x256xf32>
    %cst_93 = arith.constant dense<0.000000e+00> : vector<32x256xf32>
    %80 = tpu.matmul %77, %79, %cst_93 {dimension_numbers = #tpu.dot_dimension_numbers<[1], [0], [0], [1], [0, 0, 1, 1], [], []>} : vector<32x128xf32>, vector<128x256xf32>, vector<32x256xf32> -> vector<32x256xf32>
    %81 = arith.addf %75, %80 : vector<32x256xf32>
    %c0_94 = arith.constant 0 : index
    %c2_95 = arith.constant 2 : index
    %c0_96 = arith.constant 0 : index
    %82 = vector.load %arg10[%c0_94, %c2_95, %c0_96] : memref<2x20x128xf32, #tpu.memory_space<vmem>>, vector<2x16x128xf32>
    %83 = vector.shape_cast %82 : vector<2x16x128xf32> to vector<32x128xf32>
    %c2_97 = arith.constant 2 : index
    %c0_98 = arith.constant 0 : index
    %c0_99 = arith.constant 0 : index
    %84 = vector.load %arg5[%c2_97, %c0_98, %c0_99] : memref<5x128x256xf32, #tpu.memory_space<vmem>>, vector<1x128x256xf32>
    %85 = vector.shape_cast %84 : vector<1x128x256xf32> to vector<128x256xf32>
    %cst_100 = arith.constant dense<0.000000e+00> : vector<32x256xf32>
    %86 = tpu.matmul %83, %85, %cst_100 {dimension_numbers = #tpu.dot_dimension_numbers<[1], [0], [0], [1], [0, 0, 1, 1], [], []>} : vector<32x128xf32>, vector<128x256xf32>, vector<32x256xf32> -> vector<32x256xf32>
    %87 = arith.addf %81, %86 : vector<32x256xf32>
    %c0_101 = arith.constant 0 : index
    %c3 = arith.constant 3 : index
    %c0_102 = arith.constant 0 : index
    %88 = vector.load %arg10[%c0_101, %c3, %c0_102] : memref<2x20x128xf32, #tpu.memory_space<vmem>>, vector<2x16x128xf32>
    %89 = vector.shape_cast %88 : vector<2x16x128xf32> to vector<32x128xf32>
    %c3_103 = arith.constant 3 : index
    %c0_104 = arith.constant 0 : index
    %c0_105 = arith.constant 0 : index
    %90 = vector.load %arg5[%c3_103, %c0_104, %c0_105] : memref<5x128x256xf32, #tpu.memory_space<vmem>>, vector<1x128x256xf32>
    %91 = vector.shape_cast %90 : vector<1x128x256xf32> to vector<128x256xf32>
    %cst_106 = arith.constant dense<0.000000e+00> : vector<32x256xf32>
    %92 = tpu.matmul %89, %91, %cst_106 {dimension_numbers = #tpu.dot_dimension_numbers<[1], [0], [0], [1], [0, 0, 1, 1], [], []>} : vector<32x128xf32>, vector<128x256xf32>, vector<32x256xf32> -> vector<32x256xf32>
    %93 = arith.addf %87, %92 : vector<32x256xf32>
    %c0_107 = arith.constant 0 : index
    %c4 = arith.constant 4 : index
    %c0_108 = arith.constant 0 : index
    %94 = vector.load %arg10[%c0_107, %c4, %c0_108] : memref<2x20x128xf32, #tpu.memory_space<vmem>>, vector<2x16x128xf32>
    %95 = vector.shape_cast %94 : vector<2x16x128xf32> to vector<32x128xf32>
    %c4_109 = arith.constant 4 : index
    %c0_110 = arith.constant 0 : index
    %c0_111 = arith.constant 0 : index
    %96 = vector.load %arg5[%c4_109, %c0_110, %c0_111] : memref<5x128x256xf32, #tpu.memory_space<vmem>>, vector<1x128x256xf32>
    %97 = vector.shape_cast %96 : vector<1x128x256xf32> to vector<128x256xf32>
    %cst_112 = arith.constant dense<0.000000e+00> : vector<32x256xf32>
    %98 = tpu.matmul %95, %97, %cst_112 {dimension_numbers = #tpu.dot_dimension_numbers<[1], [0], [0], [1], [0, 0, 1, 1], [], []>} : vector<32x128xf32>, vector<128x256xf32>, vector<32x256xf32> -> vector<32x256xf32>
    %99 = arith.addf %93, %98 : vector<32x256xf32>
    %c0_113 = arith.constant 0 : index
    %c0_114 = arith.constant 0 : index
    %100 = vector.load %arg6[%c0_113, %c0_114] : memref<1x256xf32, #tpu.memory_space<vmem>>, vector<1x256xf32>
    %101 = vector.broadcast %100 : vector<1x256xf32> to vector<32x256xf32>
    %102 = arith.addf %99, %101 : vector<32x256xf32>
    %cst_115 = arith.constant 0.000000e+00 : f32
    %103 = vector.broadcast %cst_115 : f32 to vector<32x256xf32>
    %104 = arith.maximumf %102, %103 : vector<32x256xf32>
    %105 = tpu.concatenate %31, %63, %104, %34 in 1 : vector<32x256xf32>, vector<32x256xf32>, vector<32x256xf32>, vector<32x256xf32> -> vector<32x1024xf32>
    %c0_116 = arith.constant 0 : index
    %c0_117 = arith.constant 0 : index
    %106 = vector.load %arg7[%c0_116, %c0_117] : memref<32x1024xf32, #tpu.memory_space<vmem>>, vector<32x1024xf32>
    tpu.vector_store %arg7[%c0_116, %c0_117], %105 {strides = array<i32>} : memref<32x1024xf32, #tpu.memory_space<vmem>>, vector<32x1024xf32>,
    return
  }
}

</mosaic_0001>

<llo_original>
// kernel: tpu_custom_call.1
$region0: #{tpu_custom_call.1}
  #allocation0 [shape = 'u32[]', space=smem, size = 0x4, offset = 0x4, fixed_abs, tag = 'smem constant byte address 0x4 - core index']
  #allocation1 [shape = 'u32[144,128]{1,0:T(1,128)}', space=vmem, size = 0x12000, scoped, tag = 'internal scratch']
  #allocation2 [shape = 'f32[2,18,144]{2,1,0:T(8,128)}', space=vmem, size = 0xc000, scoped, tag = 'scratch operand']
  #allocation3 [shape = 'f32[2,18,128]{2,1,0:T(8,128)}', space=vmem, size = 0x6000, scoped, tag = 'scratch operand']
  #allocation4 [shape = 'f32[2,20,128]{2,1,0:T(8,128)}', space=vmem, size = 0x6000, scoped, tag = 'scratch operand']
  %s0 = inlined_call_operand.hbm [shape: f32[32,128], index: 0, kind: input, shape index: {}]
  %s1 = inlined_call_operand.hbm [shape: f32[256,768], index: 1, kind: input, shape index: {}]
  %s2 = inlined_call_operand.vmem [shape: f32[1,768], index: 2, kind: input, shape index: {}]
  %s3 = inlined_call_operand.hbm [shape: f32[3,128,256], index: 3, kind: input, shape index: {}]
  %s4 = inlined_call_operand.vmem [shape: f32[1,256], index: 4, kind: input, shape index: {}]
  %s5 = inlined_call_operand.hbm [shape: f32[5,128,256], index: 5, kind: input, shape index: {}]
  %s6 = inlined_call_operand.vmem [shape: f32[1,256], index: 6, kind: input, shape index: {}]
  %s7 = inlined_call_operand.hbm [shape: f32[32,1024], index: 7, kind: output, shape index: {}]
  %s8 = sld [smem:[#allocation0]]
  $region54: #{tpu_custom_call.1} parent=0
    _
  %s10 = ssub.s32 1, %s8
  %s11 = scalar_select 0, %s10, %s8
  $region1: #{tpu_custom_call.1} parent=0
    #allocation5 [shape = 'u8[16384]{0}', space=vmem, size = 0x4000, scoped, tag = 'input window, operand 0, single buffered']
    #allocation6 [shape = 's32[1]{0}', space=sflag, size = 0x4, scoped, tag = 'scoped memory for tpu_custom_call.1']
    #allocation7 [shape = 's32[1]{0}', space=sflag, size = 0x4, scoped, tag = 'scoped memory for tpu_custom_call.1']
    #allocation8 [shape = 'u8[786432]{0}', space=vmem, size = 0xc0000, scoped, tag = 'input window, operand 1, single buffered']
    #allocation9 [shape = 's32[1]{0}', space=sflag, size = 0x4, scoped, tag = 'scoped memory for tpu_custom_call.1']
    #allocation10 [shape = 'u8[393216]{0}', space=vmem, size = 0x60000, scoped, tag = 'input window, operand 3, single buffered']
    #allocation11 [shape = 'u8[655360]{0}', space=vmem, size = 0xa0000, scoped, tag = 'input window, operand 5, single buffered']
    #allocation12 [shape = 's32[1]{0}', space=sflag, size = 0x4, scoped, tag = 'scoped memory for tpu_custom_call.1']
    #allocation13 [shape = 'u8[131072]{0}', space=vmem, size = 0x20000, scoped, tag = 'output window, operand 0, single buffered']
    %12 = vsyncpa [#allocation6], 0
    %13 = vsyncpa [#allocation9], 0
    %14 = vsyncpa [#allocation12], 0
    %15 = vsyncpa [#allocation7], 0
    // Predicated region
    $region2: #{tpu_custom_call.1} parent=1 // pred_check
      _
    $region3: #{tpu_custom_call.1} parent=1 // pred_check_branch
      %17 = sbr.rel (0) target = $region5
    $region4: #{tpu_custom_call.1} parent=1 // pred_region
      %s19 = ssub.s32 512, 512
      %20 = vsyncadd [#allocation6], %s19
      %s21 = sshll.u32 [#allocation5], 4
      %s22 = int_to_ptr.vmem [resolvable:$true] %s21
      %27 = dma.hbm_to_vmem [thread:$0]  %s0, 512, %s22, [#allocation6], 128, 128, 8
    $region5: #{tpu_custom_call.1} parent=1 // pred_fallthru
      _
    // Predicated region
    $region6: #{tpu_custom_call.1} parent=1 // pred_check
      _
    $region7: #{tpu_custom_call.1} parent=1 // pred_check_branch
      %29 = sbr.rel (0) target = $region9
    $region8: #{tpu_custom_call.1} parent=1 // pred_region
      %s31 = ssub.s32 24576, 24576
      %32 = vsyncadd [#allocation9], %s31
      %s33 = sshll.u32 [#allocation8], 4
      %s34 = int_to_ptr.vmem [resolvable:$true] %s33
      %39 = dma.hbm_to_vmem [thread:$0]  %s1, 24576, %s34, [#allocation9], 768, 768, 48
    $region9: #{tpu_custom_call.1} parent=1 // pred_fallthru
      _
    // Predicated region
    $region10: #{tpu_custom_call.1} parent=1 // pred_check
      _
    $region11: #{tpu_custom_call.1} parent=1 // pred_check_branch
      %41 = sbr.rel (0) target = $region13
    $region12: #{tpu_custom_call.1} parent=1 // pred_region
      _
    $region13: #{tpu_custom_call.1} parent=1 // pred_fallthru
      _
    // Predicated region
    $region14: #{tpu_custom_call.1} parent=1 // pred_check
      _
    $region15: #{tpu_custom_call.1} parent=1 // pred_check_branch
      %43 = sbr.rel (0) target = $region17
    $region16: #{tpu_custom_call.1} parent=1 // pred_region
      %s45 = ssub.s32 12288, 12288
      %46 = vsyncadd [#allocation9], %s45
      %s47 = sshll.u32 [#allocation10], 4
      %s48 = int_to_ptr.vmem [resolvable:$true] %s47
      %53 = dma.hbm_to_vmem [thread:$0]  %s3, 12288, %s48, [#allocation9], 256, 256, 16
    $region17: #{tpu_custom_call.1} parent=1 // pred_fallthru
      _
    // Predicated region
    $region18: #{tpu_custom_call.1} parent=1 // pred_check
      _
    $region19: #{tpu_custom_call.1} parent=1 // pred_check_branch
      %55 = sbr.rel (0) target = $region21
    $region20: #{tpu_custom_call.1} parent=1 // pred_region
      _
    $region21: #{tpu_custom_call.1} parent=1 // pred_fallthru
      _
    // Predicated region
    $region22: #{tpu_custom_call.1} parent=1 // pred_check
      _
    $region23: #{tpu_custom_call.1} parent=1 // pred_check_branch
      %57 = sbr.rel (0) target = $region25
    $region24: #{tpu_custom_call.1} parent=1 // pred_region
      %s59 = ssub.s32 20480, 20480
      %60 = vsyncadd [#allocation12], %s59
      %s61 = sshll.u32 [#allocation11], 4
      %s62 = int_to_ptr.vmem [resolvable:$true] %s61
      %67 = dma.hbm_to_vmem [thread:$0]  %s5, 20480, %s62, [#allocation12], 256, 256, 16
    $region25: #{tpu_custom_call.1} parent=1 // pred_fallthru
      _
    // Predicated region
    $region26: #{tpu_custom_call.1} parent=1 // pred_check
      _
    $region27: #{tpu_custom_call.1} parent=1 // pred_check_branch
      %69 = sbr.rel (0) target = $region29
    $region28: #{tpu_custom_call.1} parent=1 // pred_region
      _
    $region29: #{tpu_custom_call.1} parent=1 // pred_fallthru
      _
    // Predicated region
    $region30: #{tpu_custom_call.1} parent=1 // pred_check
      _
    $region31: #{tpu_custom_call.1} parent=1 // pred_check_branch
      %71 = sbr.rel (0) target = $region33
    $region32: #{tpu_custom_call.1} parent=1 // pred_region
      %72 = dma.done [#allocation6], 512
    $region33: #{tpu_custom_call.1} parent=1 // pred_fallthru
      _
    // Predicated region
    $region34: #{tpu_custom_call.1} parent=1 // pred_check
      _
    $region35: #{tpu_custom_call.1} parent=1 // pred_check_branch
      %74 = sbr.rel (0) target = $region37
    $region36: #{tpu_custom_call.1} parent=1 // pred_region
      %75 = dma.done [#allocation9], 24576
    $region37: #{tpu_custom_call.1} parent=1 // pred_fallthru
      _
    // Predicated region
    $region38: #{tpu_custom_call.1} parent=1 // pred_check
      _
    $region39: #{tpu_custom_call.1} parent=1 // pred_check_branch
      %77 = sbr.rel (0) target = $region41
    $region40: #{tpu_custom_call.1} parent=1 // pred_region
      %78 = dma.done [#allocation9], 12288
    $region41: #{tpu_custom_call.1} parent=1 // pred_fallthru
      _
    // Predicated region
    $region42: #{tpu_custom_call.1} parent=1 // pred_check
      _
    $region43: #{tpu_custom_call.1} parent=1 // pred_check_branch
      %80 = sbr.rel (0) target = $region45
    $region44: #{tpu_custom_call.1} parent=1 // pred_region
      %81 = dma.done [#allocation12], 20480
    $region45: #{tpu_custom_call.1} parent=1 // pred_fallthru
      _
    %v82 = vld [vmem:[#allocation5] sm:$0xff]
    %v83 = vld [vmem:[#allocation5 + $0x8] sm:$0xff]
    %v84 = vld [vmem:[#allocation5 + $0x10] sm:$0xff]
    %v85 = vld [vmem:[#allocation5 + $0x18] sm:$0xff]
    %86 = vst [vmem:[#allocation2] sm:$0xff] -inf
    %vm87 = vcmask 130048
    %88 = vst.msk [vmem:[#allocation2 + $0x8] sm:$0xff] %vm87, -inf
    %89 = vst [vmem:[#allocation2 + $0x10] sm:$0xff] -inf
    %90 = vst.msk [vmem:[#allocation2 + $0x18] sm:$0xff] %vm87, -inf
    %91 = vst [vmem:[#allocation2 + $0x20] sm:$0x3] -inf
    %vm92 = vcmask 123904
    %93 = vst.msk [vmem:[#allocation2 + $0x28] sm:$0x3] %vm92, -inf
    %94 = vst [vmem:[#allocation2 + $0x30] sm:$0xff] -inf
    %95 = vst.msk [vmem:[#allocation2 + $0x38] sm:$0xff] %vm87, -inf
    %96 = vst [vmem:[#allocation2 + $0x40] sm:$0xff] -inf
    %97 = vst.msk [vmem:[#allocation2 + $0x48] sm:$0xff] %vm87, -inf
    %98 = vst [vmem:[#allocation2 + $0x50] sm:$0x3] -inf
    %99 = vst.msk [vmem:[#allocation2 + $0x58] sm:$0x3] %vm92, -inf
    %vm104 = vcmask 1040384
    %v105 = vrot.slane %v82, 7
    %v106 = vrot.slane %v83, 7
    %v107 = vsel %vm104, %v105, %v106
    %v108 = vrot.slane %v84, 7
    %v109 = vrot.slane %v85, 7
    %v110 = vsel %vm104, %v108, %v109
    %111 = vrot.lane.b32.xlu0 %v105, 8
    %v112 = vpop.permute.xlu0 %111
    %113 = vrot.lane.b32.xlu0 %v107, 8
    %v114 = vpop.permute.xlu0 %113
    %115 = vrot.lane.b32.xlu0 %v106, 8
    %v116 = vpop.permute.xlu0 %115
    %117 = vrot.lane.b32.xlu0 %v108, 8
    %v118 = vpop.permute.xlu0 %117
    %119 = vrot.lane.b32.xlu0 %v110, 8
    %v120 = vpop.permute.xlu0 %119
    %121 = vrot.lane.b32.xlu0 %v109, 8
    %v122 = vpop.permute.xlu0 %121
    %vm129 = vcmask 1047617
    %130 = vst.msk [vmem:[#allocation2] sm:$0xfe] %vm129, %v112
    %vm131 = vcmask 64513
    %132 = vst.msk [vmem:[#allocation2 + $0x8] sm:$0xfe] %vm131, %v112
    %vm133 = vcmask 1047616
    %134 = vst.msk [vmem:[#allocation2 + $0x10] sm:$0xff] %vm133, %v114
    %vm135 = vcmask 64512
    %136 = vst.msk [vmem:[#allocation2 + $0x18] sm:$0xff] %vm135, %v114
    %vm137 = vcmask 1040448
    %138 = vst.msk [vmem:[#allocation2 + $0x20] sm:$0x1] %vm137, %v116
    %vm139 = vcmask 57344
    %140 = vst.msk [vmem:[#allocation2 + $0x28] sm:$0x1] %vm139, %v116
    %141 = vst.msk [vmem:[#allocation2 + $0x30] sm:$0xfe] %vm129, %v118
    %142 = vst.msk [vmem:[#allocation2 + $0x38] sm:$0xfe] %vm131, %v118
    %143 = vst.msk [vmem:[#allocation2 + $0x40] sm:$0xff] %vm133, %v120
    %144 = vst.msk [vmem:[#allocation2 + $0x48] sm:$0xff] %vm135, %v120
    %145 = vst.msk [vmem:[#allocation2 + $0x50] sm:$0x1] %vm137, %v122
    %146 = vst.msk [vmem:[#allocation2 + $0x58] sm:$0x1] %vm139, %v122
    %v147 = vld [vmem:[#allocation2] sm:$0xff]
    %v148 = vld [vmem:[#allocation2 + $0x10] sm:$0xff]
    %v149 = vld [vmem:[#allocation2 + $0x30] sm:$0xff]
    %v150 = vld [vmem:[#allocation2 + $0x40] sm:$0xff]
    %v151 = vld [vmem:[#allocation2 + $0x8] sm:$0xff]
    %v152 = vld [vmem:[#allocation2 + $0x18] sm:$0xff]
    %v153 = vld [vmem:[#allocation2 + $0x38] sm:$0xff]
    %v154 = vld [vmem:[#allocation2 + $0x48] sm:$0xff]
    %163 = vrot.lane.b32.xlu0 %v147, 120
    %v164 = vpop.permute.xlu0 %163
    %165 = vrot.lane.b32.xlu0 %v151, 120
    %v166 = vpop.permute.xlu0 %165
    %167 = vrot.lane.b32.xlu0 %v148, 120
    %v168 = vpop.permute.xlu0 %167
    %169 = vrot.lane.b32.xlu0 %v152, 120
    %v170 = vpop.permute.xlu0 %169
    %171 = vrot.lane.b32.xlu0 %v149, 120
    %v172 = vpop.permute.xlu0 %171
    %173 = vrot.lane.b32.xlu0 %v153, 120
    %v174 = vpop.permute.xlu0 %173
    %175 = vrot.lane.b32.xlu0 %v150, 120
    %v176 = vpop.permute.xlu0 %175
    %177 = vrot.lane.b32.xlu0 %v154, 120
    %v178 = vpop.permute.xlu0 %177
    %vm179 = vcmask 982016
    %v180 = vsel %vm179, %v164, %v166
    %v181 = vsel %vm179, %v168, %v170
    %v182 = vsel %vm179, %v172, %v174
    %v183 = vsel %vm179, %v176, %v178
    %v188 = vmax.f32 %v147, %v180
    %v189 = vmax.f32 %v148, %v181
    %v190 = vmax.f32 %v149, %v182
    %v191 = vmax.f32 %v150, %v183
    %192 = vrot.lane.b32.xlu0 %v147, 112
    %v193 = vpop.permute.xlu0 %192
    %194 = vrot.lane.b32.xlu0 %v151, 112
    %v195 = vpop.permute.xlu0 %194
    %196 = vrot.lane.b32.xlu0 %v148, 112
    %v197 = vpop.permute.xlu0 %196
    %198 = vrot.lane.b32.xlu0 %v152, 112
    %v199 = vpop.permute.xlu0 %198
    %200 = vrot.lane.b32.xlu0 %v149, 112
    %v201 = vpop.permute.xlu0 %200
    %202 = vrot.lane.b32.xlu0 %v153, 112
    %v203 = vpop.permute.xlu0 %202
    %204 = vrot.lane.b32.xlu0 %v150, 112
    %v205 = vpop.permute.xlu0 %204
    %206 = vrot.lane.b32.xlu0 %v154, 112
    %v207 = vpop.permute.xlu0 %206
    %vm208 = vcmask 916480
    %v209 = vsel %vm208, %v193, %v195
    %v210 = vsel %vm208, %v197, %v199
    %v211 = vsel %vm208, %v201, %v203
    %v212 = vsel %vm208, %v205, %v207
    %v217 = vmax.f32 %v188, %v209
    %v218 = vmax.f32 %v189, %v210
    %v219 = vmax.f32 %v190, %v211
    %v220 = vmax.f32 %v191, %v212
    %v221 = vld [vmem:[#allocation2] sm:$0xfe]
    %v222 = vld [vmem:[#allocation2 + $0x20] sm:$0x1]
    %v223 = vld [vmem:[#allocation2 + $0x30] sm:$0xfe]
    %v224 = vld [vmem:[#allocation2 + $0x50] sm:$0x1]
    %vm229 = vcmask 1046528
    %v230 = vrot.slane %v221, 1
    %v231 = vrot.slane %v148, 1
    %v232 = vsel %vm229, %v230, %v231
    %v233 = vrot.slane %v222, 1
    %v234 = vsel %vm229, %v231, %v233
    %v235 = vrot.slane %v223, 1
    %v236 = vrot.slane %v150, 1
    %v237 = vsel %vm229, %v235, %v236
    %v238 = vrot.slane %v224, 1
    %v239 = vsel %vm229, %v236, %v238
    %v244 = vmax.f32 %v217, %v232
    %v245 = vmax.f32 %v218, %v234
    %v246 = vmax.f32 %v219, %v237
    %v247 = vmax.f32 %v220, %v239
    %v248 = vld [vmem:[#allocation2 + $0x8] sm:$0xfe]
    %v249 = vld [vmem:[#allocation2 + $0x28] sm:$0x1]
    %v250 = vld [vmem:[#allocation2 + $0x38] sm:$0xfe]
    %v251 = vld [vmem:[#allocation2 + $0x58] sm:$0x1]
    %v256 = vrot.slane %v248, 1
    %v257 = vrot.slane %v152, 1
    %v258 = vsel %vm229, %v256, %v257
    %v259 = vrot.slane %v249, 1
    %v260 = vsel %vm229, %v257, %v259
    %v261 = vrot.slane %v250, 1
    %v262 = vrot.slane %v154, 1
    %v263 = vsel %vm229, %v261, %v262
    %v264 = vrot.slane %v251, 1
    %v265 = vsel %vm229, %v262, %v264
    %266 = vrot.lane.b32.xlu0 %v232, 120
    %v267 = vpop.permute.xlu0 %266
    %268 = vrot.lane.b32.xlu0 %v258, 120
    %v269 = vpop.permute.xlu0 %268
    %270 = vrot.lane.b32.xlu0 %v234, 120
    %v271 = vpop.permute.xlu0 %270
    %272 = vrot.lane.b32.xlu0 %v260, 120
    %v273 = vpop.permute.xlu0 %272
    %274 = vrot.lane.b32.xlu0 %v237, 120
    %v275 = vpop.permute.xlu0 %274
    %276 = vrot.lane.b32.xlu0 %v263, 120
    %v277 = vpop.permute.xlu0 %276
    %278 = vrot.lane.b32.xlu0 %v239, 120
    %v279 = vpop.permute.xlu0 %278
    %280 = vrot.lane.b32.xlu0 %v265, 120
    %v281 = vpop.permute.xlu0 %280
    %v282 = vsel %vm179, %v267, %v269
    %v283 = vsel %vm179, %v271, %v273
    %v284 = vsel %vm179, %v275, %v277
    %v285 = vsel %vm179, %v279, %v281
    %v290 = vmax.f32 %v244, %v282
    %v291 = vmax.f32 %v245, %v283
    %v292 = vmax.f32 %v246, %v284
    %v293 = vmax.f32 %v247, %v285
    %294 = vrot.lane.b32.xlu0 %v232, 112
    %v295 = vpop.permute.xlu0 %294
    %296 = vrot.lane.b32.xlu0 %v258, 112
    %v297 = vpop.permute.xlu0 %296
    %298 = vrot.lane.b32.xlu0 %v234, 112
    %v299 = vpop.permute.xlu0 %298
    %300 = vrot.lane.b32.xlu0 %v260, 112
    %v301 = vpop.permute.xlu0 %300
    %302 = vrot.lane.b32.xlu0 %v237, 112
    %v303 = vpop.permute.xlu0 %302
    %304 = vrot.lane.b32.xlu0 %v263, 112
    %v305 = vpop.permute.xlu0 %304
    %306 = vrot.lane.b32.xlu0 %v239, 112
    %v307 = vpop.permute.xlu0 %306
    %308 = vrot.lane.b32.xlu0 %v265, 112
    %v309 = vpop.permute.xlu0 %308
    %v310 = vsel %vm208, %v295, %v297
    %v311 = vsel %vm208, %v299, %v301
    %v312 = vsel %vm208, %v303, %v305
    %v313 = vsel %vm208, %v307, %v309
    %v318 = vmax.f32 %v290, %v310
    %v319 = vmax.f32 %v291, %v311
    %v320 = vmax.f32 %v292, %v312
    %v321 = vmax.f32 %v293, %v313
    %v322 = vld [vmem:[#allocation2] sm:$0xfc]
    %v323 = vld [vmem:[#allocation2 + $0x20] sm:$0x3]
    %v324 = vld [vmem:[#allocation2 + $0x30] sm:$0xfc]
    %v325 = vld [vmem:[#allocation2 + $0x50] sm:$0x3]
    %vm330 = vcmask 1045504
    %v331 = vrot.slane %v322, 2
    %v332 = vrot.slane %v148, 2
    %v333 = vsel %vm330, %v331, %v332
    %v334 = vrot.slane %v323, 2
    %v335 = vsel %vm330, %v332, %v334
    %v336 = vrot.slane %v324, 2
    %v337 = vrot.slane %v150, 2
    %v338 = vsel %vm330, %v336, %v337
    %v339 = vrot.slane %v325, 2
    %v340 = vsel %vm330, %v337, %v339
    %v345 = vmax.f32 %v318, %v333
    %v346 = vmax.f32 %v319, %v335
    %v347 = vmax.f32 %v320, %v338
    %v348 = vmax.f32 %v321, %v340
    %v349 = vld [vmem:[#allocation2 + $0x8] sm:$0xfc]
    %v350 = vld [vmem:[#allocation2 + $0x28] sm:$0x3]
    %v351 = vld [vmem:[#allocation2 + $0x38] sm:$0xfc]
    %v352 = vld [vmem:[#allocation2 + $0x58] sm:$0x3]
    %v357 = vrot.slane %v349, 2
    %v358 = vrot.slane %v152, 2
    %v359 = vsel %vm330, %v357, %v358
    %v360 = vrot.slane %v350, 2
    %v361 = vsel %vm330, %v358, %v360
    %v362 = vrot.slane %v351, 2
    %v363 = vrot.slane %v154, 2
    %v364 = vsel %vm330, %v362, %v363
    %v365 = vrot.slane %v352, 2
    %v366 = vsel %vm330, %v363, %v365
    %367 = vrot.lane.b32.xlu0 %v333, 120
    %v368 = vpop.permute.xlu0 %367
    %369 = vrot.lane.b32.xlu0 %v359, 120
    %v370 = vpop.permute.xlu0 %369
    %371 = vrot.lane.b32.xlu0 %v335, 120
    %v372 = vpop.permute.xlu0 %371
    %373 = vrot.lane.b32.xlu0 %v361, 120
    %v374 = vpop.permute.xlu0 %373
    %375 = vrot.lane.b32.xlu0 %v338, 120
    %v376 = vpop.permute.xlu0 %375
    %377 = vrot.lane.b32.xlu0 %v364, 120
    %v378 = vpop.permute.xlu0 %377
    %379 = vrot.lane.b32.xlu0 %v340, 120
    %v380 = vpop.permute.xlu0 %379
    %381 = vrot.lane.b32.xlu0 %v366, 120
    %v382 = vpop.permute.xlu0 %381
    %v383 = vsel %vm179, %v368, %v370
    %v384 = vsel %vm179, %v372, %v374
    %v385 = vsel %vm179, %v376, %v378
    %v386 = vsel %vm179, %v380, %v382
    %v391 = vmax.f32 %v345, %v383
    %v392 = vmax.f32 %v346, %v384
    %v393 = vmax.f32 %v347, %v385
    %v394 = vmax.f32 %v348, %v386
    %395 = vrot.lane.b32.xlu0 %v333, 112
    %v396 = vpop.permute.xlu0 %395
    %397 = vrot.lane.b32.xlu0 %v359, 112
    %v398 = vpop.permute.xlu0 %397
    %399 = vrot.lane.b32.xlu0 %v335, 112
    %v400 = vpop.permute.xlu0 %399
    %401 = vrot.lane.b32.xlu0 %v361, 112
    %v402 = vpop.permute.xlu0 %401
    %403 = vrot.lane.b32.xlu0 %v338, 112
    %v404 = vpop.permute.xlu0 %403
    %405 = vrot.lane.b32.xlu0 %v364, 112
    %v406 = vpop.permute.xlu0 %405
    %407 = vrot.lane.b32.xlu0 %v340, 112
    %v408 = vpop.permute.xlu0 %407
    %409 = vrot.lane.b32.xlu0 %v366, 112
    %v410 = vpop.permute.xlu0 %409
    %v411 = vsel %vm208, %v396, %v398
    %v412 = vsel %vm208, %v400, %v402
    %v413 = vsel %vm208, %v404, %v406
    %v414 = vsel %vm208, %v408, %v410
    %v419 = vmax.f32 %v391, %v411
    %v420 = vmax.f32 %v392, %v412
    %v421 = vmax.f32 %v393, %v413
    %v422 = vmax.f32 %v394, %v414
    %v423 = vld [vmem:[#allocation8] sm:$0xff]
    %v424 = vld [vmem:[#allocation8 + $0x8] sm:$0xff]
    %v425 = vld [vmem:[#allocation8 + $0x10] sm:$0xff]
    %v426 = vld [vmem:[#allocation8 + $0x18] sm:$0xff]
    %v427 = vld [vmem:[#allocation8 + $0x20] sm:$0xff]
    %v428 = vld [vmem:[#allocation8 + $0x28] sm:$0xff]
    %v429 = vld [vmem:[#allocation8 + $0x30] sm:$0xff]
    %v430 = vld [vmem:[#allocation8 + $0x38] sm:$0xff]
    %v431 = vld [vmem:[#allocation8 + $0x40] sm:$0xff]
    %v432 = vld [vmem:[#allocation8 + $0x48] sm:$0xff]
    %v433 = vld [vmem:[#allocation8 + $0x50] sm:$0xff]
    %v434 = vld [vmem:[#allocation8 + $0x58] sm:$0xff]
    %v435 = vld [vmem:[#allocation8 + $0x60] sm:$0xff]
    %v436 = vld [vmem:[#allocation8 + $0x68] sm:$0xff]
    %v437 = vld [vmem:[#allocation8 + $0x70] sm:$0xff]
    %v438 = vld [vmem:[#allocation8 + $0x78] sm:$0xff]
    %v439 = vld [vmem:[#allocation8 + $0x80] sm:$0xff]
    %v440 = vld [vmem:[#allocation8 + $0x88] sm:$0xff]
    %v441 = vld [vmem:[#allocation8 + $0x90] sm:$0xff]
    %v442 = vld [vmem:[#allocation8 + $0x98] sm:$0xff]
    %v443 = vld [vmem:[#allocation8 + $0xa0] sm:$0xff]
    %v444 = vld [vmem:[#allocation8 + $0xa8] sm:$0xff]
    %v445 = vld [vmem:[#allocation8 + $0xb0] sm:$0xff]
    %v446 = vld [vmem:[#allocation8 + $0xb8] sm:$0xff]
    %v447 = vld [vmem:[#allocation8 + $0xc0] sm:$0xff]
    %v448 = vld [vmem:[#allocation8 + $0xc8] sm:$0xff]
    %v449 = vld [vmem:[#allocation8 + $0xd0] sm:$0xff]
    %v450 = vld [vmem:[#allocation8 + $0xd8] sm:$0xff]
    %v451 = vld [vmem:[#allocation8 + $0xe0] sm:$0xff]
    %v452 = vld [vmem:[#allocation8 + $0xe8] sm:$0xff]
    %v453 = vld [vmem:[#allocation8 + $0xf0] sm:$0xff]
    %v454 = vld [vmem:[#allocation8 + $0xf8] sm:$0xff]
    %v455 = vld [vmem:[#allocation8 + $0x100] sm:$0xff]
    %v456 = vld [vmem:[#allocation8 + $0x108] sm:$0xff]
    %v457 = vld [vmem:[#allocation8 + $0x110] sm:$0xff]
    %v458 = vld [vmem:[#allocation8 + $0x118] sm:$0xff]
    %v459 = vld [vmem:[#allocation8 + $0x120] sm:$0xff]
    %v460 = vld [vmem:[#allocation8 + $0x128] sm:$0xff]
    %v461 = vld [vmem:[#allocation8 + $0x130] sm:$0xff]
    %v462 = vld [vmem:[#allocation8 + $0x138] sm:$0xff]
    %v463 = vld [vmem:[#allocation8 + $0x140] sm:$0xff]
    %v464 = vld [vmem:[#allocation8 + $0x148] sm:$0xff]
    %v465 = vld [vmem:[#allocation8 + $0x150] sm:$0xff]
    %v466 = vld [vmem:[#allocation8 + $0x158] sm:$0xff]
    %v467 = vld [vmem:[#allocation8 + $0x160] sm:$0xff]
    %v468 = vld [vmem:[#allocation8 + $0x168] sm:$0xff]
    %v469 = vld [vmem:[#allocation8 + $0x170] sm:$0xff]
    %v470 = vld [vmem:[#allocation8 + $0x178] sm:$0xff]
    %v471 = vld [vmem:[#allocation8 + $0x180] sm:$0xff]
    %v472 = vld [vmem:[#allocation8 + $0x188] sm:$0xff]
    %v473 = vld [vmem:[#allocation8 + $0x190] sm:$0xff]
    %v474 = vld [vmem:[#allocation8 + $0x198] sm:$0xff]
    %v475 = vld [vmem:[#allocation8 + $0x1a0] sm:$0xff]
    %v476 = vld [vmem:[#allocation8 + $0x1a8] sm:$0xff]
    %v477 = vld [vmem:[#allocation8 + $0x1b0] sm:$0xff]
    %v478 = vld [vmem:[#allocation8 + $0x1b8] sm:$0xff]
    %v479 = vld [vmem:[#allocation8 + $0x1c0] sm:$0xff]
    %v480 = vld [vmem:[#allocation8 + $0x1c8] sm:$0xff]
    %v481 = vld [vmem:[#allocation8 + $0x1d0] sm:$0xff]
    %v482 = vld [vmem:[#allocation8 + $0x1d8] sm:$0xff]
    %v483 = vld [vmem:[#allocation8 + $0x1e0] sm:$0xff]
    %v484 = vld [vmem:[#allocation8 + $0x1e8] sm:$0xff]
    %v485 = vld [vmem:[#allocation8 + $0x1f0] sm:$0xff]
    %v486 = vld [vmem:[#allocation8 + $0x1f8] sm:$0xff]
    %v487 = vld [vmem:[#allocation8 + $0x200] sm:$0xff]
    %v488 = vld [vmem:[#allocation8 + $0x208] sm:$0xff]
    %v489 = vld [vmem:[#allocation8 + $0x210] sm:$0xff]
    %v490 = vld [vmem:[#allocation8 + $0x218] sm:$0xff]
    %v491 = vld [vmem:[#allocation8 + $0x220] sm:$0xff]
    %v492 = vld [vmem:[#allocation8 + $0x228] sm:$0xff]
    %v493 = vld [vmem:[#allocation8 + $0x230] sm:$0xff]
    %v494 = vld [vmem:[#allocation8 + $0x238] sm:$0xff]
    %v495 = vld [vmem:[#allocation8 + $0x240] sm:$0xff]
    %v496 = vld [vmem:[#allocation8 + $0x248] sm:$0xff]
    %v497 = vld [vmem:[#allocation8 + $0x250] sm:$0xff]
    %v498 = vld [vmem:[#allocation8 + $0x258] sm:$0xff]
    %v499 = vld [vmem:[#allocation8 + $0x260] sm:$0xff]
    %v500 = vld [vmem:[#allocation8 + $0x268] sm:$0xff]
    %v501 = vld [vmem:[#allocation8 + $0x270] sm:$0xff]
    %v502 = vld [vmem:[#allocation8 + $0x278] sm:$0xff]
    %v503 = vld [vmem:[#allocation8 + $0x280] sm:$0xff]
    %v504 = vld [vmem:[#allocation8 + $0x288] sm:$0xff]
    %v505 = vld [vmem:[#allocation8 + $0x290] sm:$0xff]
    %v506 = vld [vmem:[#allocation8 + $0x298] sm:$0xff]
    %v507 = vld [vmem:[#allocation8 + $0x2a0] sm:$0xff]
    %v508 = vld [vmem:[#allocation8 + $0x2a8] sm:$0xff]
    %v509 = vld [vmem:[#allocation8 + $0x2b0] sm:$0xff]
    %v510 = vld [vmem:[#allocation8 + $0x2b8] sm:$0xff]
    %v511 = vld [vmem:[#allocation8 + $0x2c0] sm:$0xff]
    %v512 = vld [vmem:[#allocation8 + $0x2c8] sm:$0xff]
    %v513 = vld [vmem:[#allocation8 + $0x2d0] sm:$0xff]
    %v514 = vld [vmem:[#allocation8 + $0x2d8] sm:$0xff]
    %v515 = vld [vmem:[#allocation8 + $0x2e0] sm:$0xff]
    %v516 = vld [vmem:[#allocation8 + $0x2e8] sm:$0xff]
    %v517 = vld [vmem:[#allocation8 + $0x2f0] sm:$0xff]
    %v518 = vld [vmem:[#allocation8 + $0x2f8] sm:$0xff]
    %v519 = vld [vmem:[#allocation8 + $0x300] sm:$0xff]
    %v520 = vld [vmem:[#allocation8 + $0x308] sm:$0xff]
    %v521 = vld [vmem:[#allocation8 + $0x310] sm:$0xff]
    %v522 = vld [vmem:[#allocation8 + $0x318] sm:$0xff]
    %v523 = vld [vmem:[#allocation8 + $0x320] sm:$0xff]
    %v524 = vld [vmem:[#allocation8 + $0x328] sm:$0xff]
    %v525 = vld [vmem:[#allocation8 + $0x330] sm:$0xff]
    %v526 = vld [vmem:[#allocation8 + $0x338] sm:$0xff]
    %v527 = vld [vmem:[#allocation8 + $0x340] sm:$0xff]
    %v528 = vld [vmem:[#allocation8 + $0x348] sm:$0xff]
    %v529 = vld [vmem:[#allocation8 + $0x350] sm:$0xff]
    %v530 = vld [vmem:[#allocation8 + $0x358] sm:$0xff]
    %v531 = vld [vmem:[#allocation8 + $0x360] sm:$0xff]
    %v532 = vld [vmem:[#allocation8 + $0x368] sm:$0xff]
    %v533 = vld [vmem:[#allocation8 + $0x370] sm:$0xff]
    %v534 = vld [vmem:[#allocation8 + $0x378] sm:$0xff]
    %v535 = vld [vmem:[#allocation8 + $0x380] sm:$0xff]
    %v536 = vld [vmem:[#allocation8 + $0x388] sm:$0xff]
    %v537 = vld [vmem:[#allocation8 + $0x390] sm:$0xff]
    %v538 = vld [vmem:[#allocation8 + $0x398] sm:$0xff]
    %v539 = vld [vmem:[#allocation8 + $0x3a0] sm:$0xff]
    %v540 = vld [vmem:[#allocation8 + $0x3a8] sm:$0xff]
    %v541 = vld [vmem:[#allocation8 + $0x3b0] sm:$0xff]
    %v542 = vld [vmem:[#allocation8 + $0x3b8] sm:$0xff]
    %v543 = vld [vmem:[#allocation8 + $0x3c0] sm:$0xff]
    %v544 = vld [vmem:[#allocation8 + $0x3c8] sm:$0xff]
    %v545 = vld [vmem:[#allocation8 + $0x3d0] sm:$0xff]
    %v546 = vld [vmem:[#allocation8 + $0x3d8] sm:$0xff]
    %v547 = vld [vmem:[#allocation8 + $0x3e0] sm:$0xff]
    %v548 = vld [vmem:[#allocation8 + $0x3e8] sm:$0xff]
    %v549 = vld [vmem:[#allocation8 + $0x3f0] sm:$0xff]
    %v550 = vld [vmem:[#allocation8 + $0x3f8] sm:$0xff]
    %v551 = vld [vmem:[#allocation8 + $0x400] sm:$0xff]
    %v552 = vld [vmem:[#allocation8 + $0x408] sm:$0xff]
    %v553 = vld [vmem:[#allocation8 + $0x410] sm:$0xff]
    %v554 = vld [vmem:[#allocation8 + $0x418] sm:$0xff]
    %v555 = vld [vmem:[#allocation8 + $0x420] sm:$0xff]
    %v556 = vld [vmem:[#allocation8 + $0x428] sm:$0xff]
    %v557 = vld [vmem:[#allocation8 + $0x430] sm:$0xff]
    %v558 = vld [vmem:[#allocation8 + $0x438] sm:$0xff]
    %v559 = vld [vmem:[#allocation8 + $0x440] sm:$0xff]
    %v560 = vld [vmem:[#allocation8 + $0x448] sm:$0xff]
    %v561 = vld [vmem:[#allocation8 + $0x450] sm:$0xff]
    %v562 = vld [vmem:[#allocation8 + $0x458] sm:$0xff]
    %v563 = vld [vmem:[#allocation8 + $0x460] sm:$0xff]
    %v564 = vld [vmem:[#allocation8 + $0x468] sm:$0xff]
    %v565 = vld [vmem:[#allocation8 + $0x470] sm:$0xff]
    %v566 = vld [vmem:[#allocation8 + $0x478] sm:$0xff]
    %v567 = vld [vmem:[#allocation8 + $0x480] sm:$0xff]
    %v568 = vld [vmem:[#allocation8 + $0x488] sm:$0xff]
    %v569 = vld [vmem:[#allocation8 + $0x490] sm:$0xff]
    %v570 = vld [vmem:[#allocation8 + $0x498] sm:$0xff]
    %v571 = vld [vmem:[#allocation8 + $0x4a0] sm:$0xff]
    %v572 = vld [vmem:[#allocation8 + $0x4a8] sm:$0xff]
    %v573 = vld [vmem:[#allocation8 + $0x4b0] sm:$0xff]
    %v574 = vld [vmem:[#allocation8 + $0x4b8] sm:$0xff]
    %v575 = vld [vmem:[#allocation8 + $0x4c0] sm:$0xff]
    %v576 = vld [vmem:[#allocation8 + $0x4c8] sm:$0xff]
    %v577 = vld [vmem:[#allocation8 + $0x4d0] sm:$0xff]
    %v578 = vld [vmem:[#allocation8 + $0x4d8] sm:$0xff]
    %v579 = vld [vmem:[#allocation8 + $0x4e0] sm:$0xff]
    %v580 = vld [vmem:[#allocation8 + $0x4e8] sm:$0xff]
    %v581 = vld [vmem:[#allocation8 + $0x4f0] sm:$0xff]
    %v582 = vld [vmem:[#allocation8 + $0x4f8] sm:$0xff]
    %v583 = vld [vmem:[#allocation8 + $0x500] sm:$0xff]
    %v584 = vld [vmem:[#allocation8 + $0x508] sm:$0xff]
    %v585 = vld [vmem:[#allocation8 + $0x510] sm:$0xff]
    %v586 = vld [vmem:[#allocation8 + $0x518] sm:$0xff]
    %v587 = vld [vmem:[#allocation8 + $0x520] sm:$0xff]
    %v588 = vld [vmem:[#allocation8 + $0x528] sm:$0xff]
    %v589 = vld [vmem:[#allocation8 + $0x530] sm:$0xff]
    %v590 = vld [vmem:[#allocation8 + $0x538] sm:$0xff]
    %v591 = vld [vmem:[#allocation8 + $0x540] sm:$0xff]
    %v592 = vld [vmem:[#allocation8 + $0x548] sm:$0xff]
    %v593 = vld [vmem:[#allocation8 + $0x550] sm:$0xff]
    %v594 = vld [vmem:[#allocation8 + $0x558] sm:$0xff]
    %v595 = vld [vmem:[#allocation8 + $0x560] sm:$0xff]
    %v596 = vld [vmem:[#allocation8 + $0x568] sm:$0xff]
    %v597 = vld [vmem:[#allocation8 + $0x570] sm:$0xff]
    %v598 = vld [vmem:[#allocation8 + $0x578] sm:$0xff]
    %v599 = vld [vmem:[#allocation8 + $0x580] sm:$0xff]
    %v600 = vld [vmem:[#allocation8 + $0x588] sm:$0xff]
    %v601 = vld [vmem:[#allocation8 + $0x590] sm:$0xff]
    %v602 = vld [vmem:[#allocation8 + $0x598] sm:$0xff]
    %v603 = vld [vmem:[#allocation8 + $0x5a0] sm:$0xff]
    %v604 = vld [vmem:[#allocation8 + $0x5a8] sm:$0xff]
    %v605 = vld [vmem:[#allocation8 + $0x5b0] sm:$0xff]
    %v606 = vld [vmem:[#allocation8 + $0x5b8] sm:$0xff]
    %v607 = vld [vmem:[#allocation8 + $0x5c0] sm:$0xff]
    %v608 = vld [vmem:[#allocation8 + $0x5c8] sm:$0xff]
    %v609 = vld [vmem:[#allocation8 + $0x5d0] sm:$0xff]
    %v610 = vld [vmem:[#allocation8 + $0x5d8] sm:$0xff]
    %v611 = vld [vmem:[#allocation8 + $0x5e0] sm:$0xff]
    %v612 = vld [vmem:[#allocation8 + $0x5e8] sm:$0xff]
    %v613 = vld [vmem:[#allocation8 + $0x5f0] sm:$0xff]
    %v614 = vld [vmem:[#allocation8 + $0x5f8] sm:$0xff]
    %v615 = vld [vmem:[%s2] sm:$0x3f]
    %v617 = vlaneseq
    %v618 = vshrl.u32 %v617, 7
    %v619 = vsub.s32 0, %v618
    %v620 = vrot.slane %v615, %v619
    %v621 = vlaneseq
    %v622 = vshrl.u32 %v621, 7
    %v623 = vsub.s32 1, %v622
    %v624 = vrot.slane %v615, %v623
    %v625 = vlaneseq
    %v626 = vshrl.u32 %v625, 7
    %v627 = vsub.s32 2, %v626
    %v628 = vrot.slane %v615, %v627
    %v629 = vlaneseq
    %v630 = vshrl.u32 %v629, 7
    %v631 = vsub.s32 3, %v630
    %v632 = vrot.slane %v615, %v631
    %v633 = vlaneseq
    %v634 = vshrl.u32 %v633, 7
    %v635 = vsub.s32 4, %v634
    %v636 = vrot.slane %v615, %v635
    %v637 = vlaneseq
    %v638 = vshrl.u32 %v637, 7
    %v639 = vsub.s32 5, %v638
    %v640 = vrot.slane %v615, %v639
    %647 = vmatprep.subr.mxu0 %v424
    %648 = vmatpush1.msra.mxu0 %v423
    %649 = vmatprep.subr.mxu0 %v430
    %650 = vmatpush1.msra.mxu0 %v429
    %651 = vmatprep.subr.mxu0 %v436
    %652 = vmatpush1.msra.mxu0 %v435
    %653 = vmatprep.subr.mxu0 %v442
    %654 = vmatpush1.msra.mxu0 %v441
    %655 = vmatprep.subr.mxu0 %v448
    %656 = vmatpush1.msra.mxu0 %v447
    %657 = vmatprep.subr.mxu0 %v454
    %658 = vmatpush1.msra.mxu0 %v453
    %659 = vmatprep.subr.mxu0 %v460
    %660 = vmatpush1.msra.mxu0 %v459
    %661 = vmatprep.subr.mxu0 %v466
    %662 = vmatpush1.msra.mxu0 %v465
    %663 = vmatprep.subr.mxu0 %v472
    %664 = vmatpush1.msra.mxu0 %v471
    %665 = vmatprep.subr.mxu0 %v478
    %666 = vmatpush1.msra.mxu0 %v477
    %667 = vmatprep.subr.mxu0 %v484
    %668 = vmatpush1.msra.mxu0 %v483
    %669 = vmatprep.subr.mxu0 %v490
    %670 = vmatpush1.msra.mxu0 %v489
    %671 = vmatprep.subr.mxu0 %v496
    %672 = vmatpush1.msra.mxu0 %v495
    %673 = vmatprep.subr.mxu0 %v502
    %674 = vmatpush1.msra.mxu0 %v501
    %675 = vmatprep.subr.mxu0 %v508
    %676 = vmatpush1.msra.mxu0 %v507
    %677 = vmatprep.subr.mxu0 %v514
    %678 = vmatpush1.msra.mxu0 %v513
    %679 = vmatprep.subr.mxu0 %v520
    %680 = vmatpush1.msra.mxu0 %v519
    %681 = vmatprep.subr.mxu0 %v526
    %682 = vmatpush1.msra.mxu0 %v525
    %683 = vmatprep.subr.mxu0 %v532
    %684 = vmatpush1.msra.mxu0 %v531
    %685 = vmatprep.subr.mxu0 %v538
    %686 = vmatpush1.msra.mxu0 %v537
    %687 = vmatprep.subr.mxu0 %v544
    %688 = vmatpush1.msra.mxu0 %v543
    %689 = vmatprep.subr.mxu0 %v550
    %690 = vmatpush1.msra.mxu0 %v549
    %691 = vmatprep.subr.mxu0 %v556
    %692 = vmatpush1.msra.mxu0 %v555
    %693 = vmatprep.subr.mxu0 %v562
    %694 = vmatpush1.msra.mxu0 %v561
    %695 = vmatprep.subr.mxu0 %v568
    %696 = vmatpush1.msra.mxu0 %v567
    %697 = vmatprep.subr.mxu0 %v574
    %698 = vmatpush1.msra.mxu0 %v573
    %699 = vmatprep.subr.mxu0 %v580
    %700 = vmatpush1.msra.mxu0 %v579
    %701 = vmatprep.subr.mxu0 %v586
    %702 = vmatpush1.msra.mxu0 %v585
    %703 = vmatprep.subr.mxu0 %v592
    %704 = vmatpush1.msra.mxu0 %v591
    %705 = vmatprep.subr.mxu0 %v598
    %706 = vmatpush1.msra.mxu0 %v597
    %707 = vmatprep.subr.mxu0 %v604
    %708 = vmatpush1.msra.mxu0 %v603
    %709 = vmatprep.subr.mxu0 %v610
    %710 = vmatpush1.msra.mxu0 %v609
    %711 = vmatprep.mubr.f32.mxu0 %v419
    %712 = vmatmul.mubr.f32.gmra.mrb[0].mxu0 %v82
    %v713 = vpop.f32.mrb[0].mxu0
    %v714 = vadd.f32 %v620, %v713
    %v715 = vpop.f32.mrb[0].mxu0
    %v716 = vadd.f32 %v624, %v715
    %717 = vmatprep.mubr.f32.mxu0 %v420
    %718 = vmatmul.mubr.f32.gmra.mrb[0].mxu0 %v83
    %v719 = vpop.f32.mrb[0].mxu0
    %v720 = vadd.f32 %v620, %v719
    %v721 = vpop.f32.mrb[0].mxu0
    %v722 = vadd.f32 %v624, %v721
    %723 = vmatprep.mubr.f32.mxu0 %v421
    %724 = vmatmul.mubr.f32.gmra.mrb[0].mxu0 %v84
    %v725 = vpop.f32.mrb[0].mxu0
    %v726 = vadd.f32 %v620, %v725
    %v727 = vpop.f32.mrb[0].mxu0
    %v728 = vadd.f32 %v624, %v727
    %729 = vmatprep.mubr.f32.mxu0 %v422
    %730 = vmatmul.mubr.f32.gmra.mrb[0].mxu0 %v85
    %v731 = vpop.f32.mrb[0].mxu0
    %v732 = vadd.f32 %v620, %v731
    %v733 = vpop.f32.mrb[0].mxu0
    %v734 = vadd.f32 %v624, %v733
    %735 = vdwg.mxu0
    %736 = vmatprep.subr.mxu0 %v426
    %737 = vmatpush1.msra.mxu0 %v425
    %738 = vmatprep.subr.mxu0 %v432
    %739 = vmatpush1.msra.mxu0 %v431
    %740 = vmatprep.subr.mxu0 %v438
    %741 = vmatpush1.msra.mxu0 %v437
    %742 = vmatprep.subr.mxu0 %v444
    %743 = vmatpush1.msra.mxu0 %v443
    %744 = vmatprep.subr.mxu0 %v450
    %745 = vmatpush1.msra.mxu0 %v449
    %746 = vmatprep.subr.mxu0 %v456
    %747 = vmatpush1.msra.mxu0 %v455
    %748 = vmatprep.subr.mxu0 %v462
    %749 = vmatpush1.msra.mxu0 %v461
    %750 = vmatprep.subr.mxu0 %v468
    %751 = vmatpush1.msra.mxu0 %v467
    %752 = vmatprep.subr.mxu0 %v474
    %753 = vmatpush1.msra.mxu0 %v473
    %754 = vmatprep.subr.mxu0 %v480
    %755 = vmatpush1.msra.mxu0 %v479
    %756 = vmatprep.subr.mxu0 %v486
    %757 = vmatpush1.msra.mxu0 %v485
    %758 = vmatprep.subr.mxu0 %v492
    %759 = vmatpush1.msra.mxu0 %v491
    %760 = vmatprep.subr.mxu0 %v498
    %761 = vmatpush1.msra.mxu0 %v497
    %762 = vmatprep.subr.mxu0 %v504
    %763 = vmatpush1.msra.mxu0 %v503
    %764 = vmatprep.subr.mxu0 %v510
    %765 = vmatpush1.msra.mxu0 %v509
    %766 = vmatprep.subr.mxu0 %v516
    %767 = vmatpush1.msra.mxu0 %v515
    %768 = vmatprep.subr.mxu0 %v522
    %769 = vmatpush1.msra.mxu0 %v521
    %770 = vmatprep.subr.mxu0 %v528
    %771 = vmatpush1.msra.mxu0 %v527
    %772 = vmatprep.subr.mxu0 %v534
    %773 = vmatpush1.msra.mxu0 %v533
    %774 = vmatprep.subr.mxu0 %v540
    %775 = vmatpush1.msra.mxu0 %v539
    %776 = vmatprep.subr.mxu0 %v546
    %777 = vmatpush1.msra.mxu0 %v545
    %778 = vmatprep.subr.mxu0 %v552
    %779 = vmatpush1.msra.mxu0 %v551
    %780 = vmatprep.subr.mxu0 %v558
    %781 = vmatpush1.msra.mxu0 %v557
    %782 = vmatprep.subr.mxu0 %v564
    %783 = vmatpush1.msra.mxu0 %v563
    %784 = vmatprep.subr.mxu0 %v570
    %785 = vmatpush1.msra.mxu0 %v569
    %786 = vmatprep.subr.mxu0 %v576
    %787 = vmatpush1.msra.mxu0 %v575
    %788 = vmatprep.subr.mxu0 %v582
    %789 = vmatpush1.msra.mxu0 %v581
    %790 = vmatprep.subr.mxu0 %v588
    %791 = vmatpush1.msra.mxu0 %v587
    %792 = vmatprep.subr.mxu0 %v594
    %793 = vmatpush1.msra.mxu0 %v593
    %794 = vmatprep.subr.mxu0 %v600
    %795 = vmatpush1.msra.mxu0 %v599
    %796 = vmatprep.subr.mxu0 %v606
    %797 = vmatpush1.msra.mxu0 %v605
    %798 = vmatprep.subr.mxu0 %v612
    %799 = vmatpush1.msra.mxu0 %v611
    %800 = vmatprep.mubr.f32.mxu0 %v419
    %801 = vmatmul.mubr.f32.gmra.mrb[0].mxu0 %v82
    %v802 = vpop.f32.mrb[0].mxu0
    %v803 = vadd.f32 %v628, %v802
    %v804 = vpop.f32.mrb[0].mxu0
    %v805 = vadd.f32 %v632, %v804
    %806 = vmatprep.mubr.f32.mxu0 %v420
    %807 = vmatmul.mubr.f32.gmra.mrb[0].mxu0 %v83
    %v808 = vpop.f32.mrb[0].mxu0
    %v809 = vadd.f32 %v628, %v808
    %v810 = vpop.f32.mrb[0].mxu0
    %v811 = vadd.f32 %v632, %v810
    %812 = vmatprep.mubr.f32.mxu0 %v421
    %813 = vmatmul.mubr.f32.gmra.mrb[0].mxu0 %v84
    %v814 = vpop.f32.mrb[0].mxu0
    %v815 = vadd.f32 %v628, %v814
    %v816 = vpop.f32.mrb[0].mxu0
    %v817 = vadd.f32 %v632, %v816
    %818 = vmatprep.mubr.f32.mxu0 %v422
    %819 = vmatmul.mubr.f32.gmra.mrb[0].mxu0 %v85
    %v820 = vpop.f32.mrb[0].mxu0
    %v821 = vadd.f32 %v628, %v820
    %v822 = vpop.f32.mrb[0].mxu0
    %v823 = vadd.f32 %v632, %v822
    %824 = vdwg.mxu0
    %825 = vmatprep.subr.mxu0 %v428
    %826 = vmatpush1.msra.mxu0 %v427
    %827 = vmatprep.subr.mxu0 %v434
    %828 = vmatpush1.msra.mxu0 %v433
    %829 = vmatprep.subr.mxu0 %v440
    %830 = vmatpush1.msra.mxu0 %v439
    %831 = vmatprep.subr.mxu0 %v446
    %832 = vmatpush1.msra.mxu0 %v445
    %833 = vmatprep.subr.mxu0 %v452
    %834 = vmatpush1.msra.mxu0 %v451
    %835 = vmatprep.subr.mxu0 %v458
    %836 = vmatpush1.msra.mxu0 %v457
    %837 = vmatprep.subr.mxu0 %v464
    %838 = vmatpush1.msra.mxu0 %v463
    %839 = vmatprep.subr.mxu0 %v470
    %840 = vmatpush1.msra.mxu0 %v469
    %841 = vmatprep.subr.mxu0 %v476
    %842 = vmatpush1.msra.mxu0 %v475
    %843 = vmatprep.subr.mxu0 %v482
    %844 = vmatpush1.msra.mxu0 %v481
    %845 = vmatprep.subr.mxu0 %v488
    %846 = vmatpush1.msra.mxu0 %v487
    %847 = vmatprep.subr.mxu0 %v494
    %848 = vmatpush1.msra.mxu0 %v493
    %849 = vmatprep.subr.mxu0 %v500
    %850 = vmatpush1.msra.mxu0 %v499
    %851 = vmatprep.subr.mxu0 %v506
    %852 = vmatpush1.msra.mxu0 %v505
    %853 = vmatprep.subr.mxu0 %v512
    %854 = vmatpush1.msra.mxu0 %v511
    %855 = vmatprep.subr.mxu0 %v518
    %856 = vmatpush1.msra.mxu0 %v517
    %857 = vmatprep.subr.mxu0 %v524
    %858 = vmatpush1.msra.mxu0 %v523
    %859 = vmatprep.subr.mxu0 %v530
    %860 = vmatpush1.msra.mxu0 %v529
    %861 = vmatprep.subr.mxu0 %v536
    %862 = vmatpush1.msra.mxu0 %v535
    %863 = vmatprep.subr.mxu0 %v542
    %864 = vmatpush1.msra.mxu0 %v541
    %865 = vmatprep.subr.mxu0 %v548
    %866 = vmatpush1.msra.mxu0 %v547
    %867 = vmatprep.subr.mxu0 %v554
    %868 = vmatpush1.msra.mxu0 %v553
    %869 = vmatprep.subr.mxu0 %v560
    %870 = vmatpush1.msra.mxu0 %v559
    %871 = vmatprep.subr.mxu0 %v566
    %872 = vmatpush1.msra.mxu0 %v565
    %873 = vmatprep.subr.mxu0 %v572
    %874 = vmatpush1.msra.mxu0 %v571
    %875 = vmatprep.subr.mxu0 %v578
    %876 = vmatpush1.msra.mxu0 %v577
    %877 = vmatprep.subr.mxu0 %v584
    %878 = vmatpush1.msra.mxu0 %v583
    %879 = vmatprep.subr.mxu0 %v590
    %880 = vmatpush1.msra.mxu0 %v589
    %881 = vmatprep.subr.mxu0 %v596
    %882 = vmatpush1.msra.mxu0 %v595
    %883 = vmatprep.subr.mxu0 %v602
    %884 = vmatpush1.msra.mxu0 %v601
    %885 = vmatprep.subr.mxu0 %v608
    %886 = vmatpush1.msra.mxu0 %v607
    %887 = vmatprep.subr.mxu0 %v614
    %888 = vmatpush1.msra.mxu0 %v613
    %889 = vmatprep.mubr.f32.mxu0 %v419
    %890 = vmatmul.mubr.f32.gmra.mrb[0].mxu0 %v82
    %v891 = vpop.f32.mrb[0].mxu0
    %v892 = vadd.f32 %v636, %v891
    %v893 = vpop.f32.mrb[0].mxu0
    %v894 = vadd.f32 %v640, %v893
    %895 = vmatprep.mubr.f32.mxu0 %v420
    %896 = vmatmul.mubr.f32.gmra.mrb[0].mxu0 %v83
    %v897 = vpop.f32.mrb[0].mxu0
    %v898 = vadd.f32 %v636, %v897
    %v899 = vpop.f32.mrb[0].mxu0
    %v900 = vadd.f32 %v640, %v899
    %901 = vmatprep.mubr.f32.mxu0 %v421
    %902 = vmatmul.mubr.f32.gmra.mrb[0].mxu0 %v84
    %v903 = vpop.f32.mrb[0].mxu0
    %v904 = vadd.f32 %v636, %v903
    %v905 = vpop.f32.mrb[0].mxu0
    %v906 = vadd.f32 %v640, %v905
    %907 = vmatprep.mubr.f32.mxu0 %v422
    %908 = vmatmul.mubr.f32.gmra.mrb[0].mxu0 %v85
    %v909 = vpop.f32.mrb[0].mxu0
    %v910 = vadd.f32 %v636, %v909
    %v911 = vpop.f32.mrb[0].mxu0
    %v912 = vadd.f32 %v640, %v911
    %913 = vdwg.mxu0
    %v914 = vmax.f32 %v714, 0.0
    %v915 = vmax.f32 %v716, 0.0
    %v916 = vmax.f32 %v803, 0.0
    %v917 = vmax.f32 %v805, 0.0
    %v918 = vmax.f32 %v892, 0.0
    %v919 = vmax.f32 %v894, 0.0
    %v920 = vmax.f32 %v720, 0.0
    %v921 = vmax.f32 %v722, 0.0
    %v922 = vmax.f32 %v809, 0.0
    %v923 = vmax.f32 %v811, 0.0
    %v924 = vmax.f32 %v898, 0.0
    %v925 = vmax.f32 %v900, 0.0
    %v926 = vmax.f32 %v726, 0.0
    %v927 = vmax.f32 %v728, 0.0
    %v928 = vmax.f32 %v815, 0.0
    %v929 = vmax.f32 %v817, 0.0
    %v930 = vmax.f32 %v904, 0.0
    %v931 = vmax.f32 %v906, 0.0
    %v932 = vmax.f32 %v732, 0.0
    %v933 = vmax.f32 %v734, 0.0
    %v934 = vmax.f32 %v821, 0.0
    %v935 = vmax.f32 %v823, 0.0
    %v936 = vmax.f32 %v910, 0.0
    %v937 = vmax.f32 %v912, 0.0
    %938 = vst [vmem:[#allocation3] sm:$0x1] 0.0
    %939 = vst [vmem:[#allocation3 + $0x18] sm:$0x1] 0.0
    %940 = vst [vmem:[#allocation3 + $0x11] sm:$0x1] 0.0
    %941 = vst [vmem:[#allocation3 + $0x29] sm:$0x1] 0.0
    %942 = vst [vmem:[#allocation3 + $0x1] sm:$0xff] %v916
    %943 = vst [vmem:[#allocation3 + $0x9] sm:$0xff] %v922
    %944 = vst [vmem:[#allocation3 + $0x19] sm:$0xff] %v928
    %945 = vst [vmem:[#allocation3 + $0x21] sm:$0xff] %v934
    %v946 = vld [vmem:[#allocation3] sm:$0xff]
    %v947 = vld [vmem:[#allocation3 + $0x8] sm:$0xff]
    %v948 = vld [vmem:[#allocation3 + $0x18] sm:$0xff]
    %v949 = vld [vmem:[#allocation3 + $0x20] sm:$0xff]
    %v950 = vld [vmem:[#allocation10] sm:$0xff]
    %v951 = vld [vmem:[#allocation10 + $0x8] sm:$0xff]
    %v952 = vld [vmem:[#allocation10 + $0x10] sm:$0xff]
    %v953 = vld [vmem:[#allocation10 + $0x18] sm:$0xff]
    %v954 = vld [vmem:[#allocation10 + $0x20] sm:$0xff]
    %v955 = vld [vmem:[#allocation10 + $0x28] sm:$0xff]
    %v956 = vld [vmem:[#allocation10 + $0x30] sm:$0xff]
    %v957 = vld [vmem:[#allocation10 + $0x38] sm:$0xff]
    %v958 = vld [vmem:[#allocation10 + $0x40] sm:$0xff]
    %v959 = vld [vmem:[#allocation10 + $0x48] sm:$0xff]
    %v960 = vld [vmem:[#allocation10 + $0x50] sm:$0xff]
    %v961 = vld [vmem:[#allocation10 + $0x58] sm:$0xff]
    %v962 = vld [vmem:[#allocation10 + $0x60] sm:$0xff]
    %v963 = vld [vmem:[#allocation10 + $0x68] sm:$0xff]
    %v964 = vld [vmem:[#allocation10 + $0x70] sm:$0xff]
    %v965 = vld [vmem:[#allocation10 + $0x78] sm:$0xff]
    %v966 = vld [vmem:[#allocation10 + $0x80] sm:$0xff]
    %v967 = vld [vmem:[#allocation10 + $0x88] sm:$0xff]
    %v968 = vld [vmem:[#allocation10 + $0x90] sm:$0xff]
    %v969 = vld [vmem:[#allocation10 + $0x98] sm:$0xff]
    %v970 = vld [vmem:[#allocation10 + $0xa0] sm:$0xff]
    %v971 = vld [vmem:[#allocation10 + $0xa8] sm:$0xff]
    %v972 = vld [vmem:[#allocation10 + $0xb0] sm:$0xff]
    %v973 = vld [vmem:[#allocation10 + $0xb8] sm:$0xff]
    %v974 = vld [vmem:[#allocation10 + $0xc0] sm:$0xff]
    %v975 = vld [vmem:[#allocation10 + $0xc8] sm:$0xff]
    %v976 = vld [vmem:[#allocation10 + $0xd0] sm:$0xff]
    %v977 = vld [vmem:[#allocation10 + $0xd8] sm:$0xff]
    %v978 = vld [vmem:[#allocation10 + $0xe0] sm:$0xff]
    %v979 = vld [vmem:[#allocation10 + $0xe8] sm:$0xff]
    %v980 = vld [vmem:[#allocation10 + $0xf0] sm:$0xff]
    %v981 = vld [vmem:[#allocation10 + $0xf8] sm:$0xff]
    %v982 = vld [vmem:[#allocation3 + $0x1] sm:$0xff]
    %v983 = vld [vmem:[#allocation3 + $0x9] sm:$0xff]
    %v984 = vld [vmem:[#allocation3 + $0x19] sm:$0xff]
    %v985 = vld [vmem:[#allocation3 + $0x21] sm:$0xff]
    %s986 = scalar_lea.vmem [#allocation10], 256
    %v987 = vld [vmem:[%s986] sm:$0xff]
    %v988 = vld [vmem:[%s986 + $0x8] sm:$0xff]
    %v989 = vld [vmem:[%s986 + $0x10] sm:$0xff]
    %v990 = vld [vmem:[%s986 + $0x18] sm:$0xff]
    %v991 = vld [vmem:[%s986 + $0x20] sm:$0xff]
    %v992 = vld [vmem:[%s986 + $0x28] sm:$0xff]
    %v993 = vld [vmem:[%s986 + $0x30] sm:$0xff]
    %v994 = vld [vmem:[%s986 + $0x38] sm:$0xff]
    %v995 = vld [vmem:[%s986 + $0x40] sm:$0xff]
    %v996 = vld [vmem:[%s986 + $0x48] sm:$0xff]
    %v997 = vld [vmem:[%s986 + $0x50] sm:$0xff]
    %v998 = vld [vmem:[%s986 + $0x58] sm:$0xff]
    %v999 = vld [vmem:[%s986 + $0x60] sm:$0xff]
    %v1000 = vld [vmem:[%s986 + $0x68] sm:$0xff]
    %v1001 = vld [vmem:[%s986 + $0x70] sm:$0xff]
    %v1002 = vld [vmem:[%s986 + $0x78] sm:$0xff]
    %v1003 = vld [vmem:[%s986 + $0x80] sm:$0xff]
    %v1004 = vld [vmem:[%s986 + $0x88] sm:$0xff]
    %v1005 = vld [vmem:[%s986 + $0x90] sm:$0xff]
    %v1006 = vld [vmem:[%s986 + $0x98] sm:$0xff]
    %v1007 = vld [vmem:[%s986 + $0xa0] sm:$0xff]
    %v1008 = vld [vmem:[%s986 + $0xa8] sm:$0xff]
    %v1009 = vld [vmem:[%s986 + $0xb0] sm:$0xff]
    %v1010 = vld [vmem:[%s986 + $0xb8] sm:$0xff]
    %v1011 = vld [vmem:[%s986 + $0xc0] sm:$0xff]
    %v1012 = vld [vmem:[%s986 + $0xc8] sm:$0xff]
    %v1013 = vld [vmem:[%s986 + $0xd0] sm:$0xff]
    %v1014 = vld [vmem:[%s986 + $0xd8] sm:$0xff]
    %v1015 = vld [vmem:[%s986 + $0xe0] sm:$0xff]
    %v1016 = vld [vmem:[%s986 + $0xe8] sm:$0xff]
    %v1017 = vld [vmem:[%s986 + $0xf0] sm:$0xff]
    %v1018 = vld [vmem:[%s986 + $0xf8] sm:$0xff]
    %1019 = vmatprep.subr.mxu0 %v988
    %1020 = vmatpush1.msra.mxu0 %v987
    %1021 = vmatprep.subr.mxu0 %v990
    %1022 = vmatpush1.msra.mxu0 %v989
    %1023 = vmatprep.subr.mxu0 %v992
    %1024 = vmatpush1.msra.mxu0 %v991
    %1025 = vmatprep.subr.mxu0 %v994
    %1026 = vmatpush1.msra.mxu0 %v993
    %1027 = vmatprep.subr.mxu0 %v996
    %1028 = vmatpush1.msra.mxu0 %v995
    %1029 = vmatprep.subr.mxu0 %v998
    %1030 = vmatpush1.msra.mxu0 %v997
    %1031 = vmatprep.subr.mxu0 %v1000
    %1032 = vmatpush1.msra.mxu0 %v999
    %1033 = vmatprep.subr.mxu0 %v1002
    %1034 = vmatpush1.msra.mxu0 %v1001
    %1035 = vmatprep.subr.mxu0 %v1004
    %1036 = vmatpush1.msra.mxu0 %v1003
    %1037 = vmatprep.subr.mxu0 %v1006
    %1038 = vmatpush1.msra.mxu0 %v1005
    %1039 = vmatprep.subr.mxu0 %v1008
    %1040 = vmatpush1.msra.mxu0 %v1007
    %1041 = vmatprep.subr.mxu0 %v1010
    %1042 = vmatpush1.msra.mxu0 %v1009
    %1043 = vmatprep.subr.mxu0 %v1012
    %1044 = vmatpush1.msra.mxu0 %v1011
    %1045 = vmatprep.subr.mxu0 %v1014
    %1046 = vmatpush1.msra.mxu0 %v1013
    %1047 = vmatprep.subr.mxu0 %v1016
    %1048 = vmatpush1.msra.mxu0 %v1015
    %1049 = vmatprep.subr.mxu0 %v1018
    %1050 = vmatpush1.msra.mxu0 %v1017
    %1051 = vmatprep.subr.mxu0 0.0
    %1052 = vmatpush1.msra.mxu0 0.0
    %1053 = vmatprep.subr.mxu0 0.0
    %1054 = vmatpush1.msra.mxu0 0.0
    %1055 = vmatprep.subr.mxu0 0.0
    %1056 = vmatpush1.msra.mxu0 0.0
    %1057 = vmatprep.subr.mxu0 0.0
    %1058 = vmatpush1.msra.mxu0 0.0
    %1059 = vmatprep.subr.mxu0 0.0
    %1060 = vmatpush1.msra.mxu0 0.0
    %1061 = vmatprep.subr.mxu0 0.0
    %1062 = vmatpush1.msra.mxu0 0.0
    %1063 = vmatprep.subr.mxu0 0.0
    %1064 = vmatpush1.msra.mxu0 0.0
    %1065 = vmatprep.subr.mxu0 0.0
    %1066 = vmatpush1.msra.mxu0 0.0
    %1067 = vmatprep.subr.mxu0 0.0
    %1068 = vmatpush1.msra.mxu0 0.0
    %1069 = vmatprep.subr.mxu0 0.0
    %1070 = vmatpush1.msra.mxu0 0.0
    %1071 = vmatprep.subr.mxu0 0.0
    %1072 = vmatpush1.msra.mxu0 0.0
    %1073 = vmatprep.subr.mxu0 0.0
    %1074 = vmatpush1.msra.mxu0 0.0
    %1075 = vmatprep.subr.mxu0 0.0
    %1076 = vmatpush1.msra.mxu0 0.0
    %1077 = vmatprep.subr.mxu0 0.0
    %1078 = vmatpush1.msra.mxu0 0.0
    %1079 = vmatprep.subr.mxu0 0.0
    %1080 = vmatpush1.msra.mxu0 0.0
    %1081 = vmatprep.subr.mxu0 0.0
    %1082 = vmatpush1.msra.mxu0 0.0
    %1083 = vmatprep.mubr.f32.mxu0 0.0
    %1084 = vmatmul.mubr.f32.gmra.mrb[0].mxu0 %v982
    %v1085 = vpop.f32.mrb[0].mxu0
    %v1086 = vadd.f32 0.0, %v1085
    %v1087 = vpop.f32.mrb[0].mxu0
    %v1088 = vadd.f32 0.0, %v1087
    %1089 = vmatprep.mubr.f32.mxu0 0.0
    %1090 = vmatmul.mubr.f32.gmra.mrb[0].mxu0 %v983
    %v1091 = vpop.f32.mrb[0].mxu0
    %v1092 = vadd.f32 0.0, %v1091
    %v1093 = vpop.f32.mrb[0].mxu0
    %v1094 = vadd.f32 0.0, %v1093
    %1095 = vmatprep.mubr.f32.mxu0 0.0
    %1096 = vmatmul.mubr.f32.gmra.mrb[0].mxu0 %v984
    %v1097 = vpop.f32.mrb[0].mxu0
    %v1098 = vadd.f32 0.0, %v1097
    %v1099 = vpop.f32.mrb[0].mxu0
    %v1100 = vadd.f32 0.0, %v1099
    %1101 = vmatprep.mubr.f32.mxu0 0.0
    %1102 = vmatmul.mubr.f32.gmra.mrb[0].mxu0 %v985
    %v1103 = vpop.f32.mrb[0].mxu0
    %v1104 = vadd.f32 0.0, %v1103
    %v1105 = vpop.f32.mrb[0].mxu0
    %v1106 = vadd.f32 0.0, %v1105
    %1107 = vdwg.mxu0
    %1108 = vmatprep.subr.mxu0 %v951
    %1109 = vmatpush1.msra.mxu0 %v950
    %1110 = vmatprep.subr.mxu0 %v953
    %1111 = vmatpush1.msra.mxu0 %v952
    %1112 = vmatprep.subr.mxu0 %v955
    %1113 = vmatpush1.msra.mxu0 %v954
    %1114 = vmatprep.subr.mxu0 %v957
    %1115 = vmatpush1.msra.mxu0 %v956
    %1116 = vmatprep.subr.mxu0 %v959
    %1117 = vmatpush1.msra.mxu0 %v958
    %1118 = vmatprep.subr.mxu0 %v961
    %1119 = vmatpush1.msra.mxu0 %v960
    %1120 = vmatprep.subr.mxu0 %v963
    %1121 = vmatpush1.msra.mxu0 %v962
    %1122 = vmatprep.subr.mxu0 %v965
    %1123 = vmatpush1.msra.mxu0 %v964
    %1124 = vmatprep.subr.mxu0 %v967
    %1125 = vmatpush1.msra.mxu0 %v966
    %1126 = vmatprep.subr.mxu0 %v969
    %1127 = vmatpush1.msra.mxu0 %v968
    %1128 = vmatprep.subr.mxu0 %v971
    %1129 = vmatpush1.msra.mxu0 %v970
    %1130 = vmatprep.subr.mxu0 %v973
    %1131 = vmatpush1.msra.mxu0 %v972
    %1132 = vmatprep.subr.mxu0 %v975
    %1133 = vmatpush1.msra.mxu0 %v974
    %1134 = vmatprep.subr.mxu0 %v977
    %1135 = vmatpush1.msra.mxu0 %v976
    %1136 = vmatprep.subr.mxu0 %v979
    %1137 = vmatpush1.msra.mxu0 %v978
    %1138 = vmatprep.subr.mxu0 %v981
    %1139 = vmatpush1.msra.mxu0 %v980
    %1140 = vmatprep.subr.mxu0 0.0
    %1141 = vmatpush1.msra.mxu0 0.0
    %1142 = vmatprep.subr.mxu0 0.0
    %1143 = vmatpush1.msra.mxu0 0.0
    %1144 = vmatprep.subr.mxu0 0.0
    %1145 = vmatpush1.msra.mxu0 0.0
    %1146 = vmatprep.subr.mxu0 0.0
    %1147 = vmatpush1.msra.mxu0 0.0
    %1148 = vmatprep.subr.mxu0 0.0
    %1149 = vmatpush1.msra.mxu0 0.0
    %1150 = vmatprep.subr.mxu0 0.0
    %1151 = vmatpush1.msra.mxu0 0.0
    %1152 = vmatprep.subr.mxu0 0.0
    %1153 = vmatpush1.msra.mxu0 0.0
    %1154 = vmatprep.subr.mxu0 0.0
    %1155 = vmatpush1.msra.mxu0 0.0
    %1156 = vmatprep.subr.mxu0 0.0
    %1157 = vmatpush1.msra.mxu0 0.0
    %1158 = vmatprep.subr.mxu0 0.0
    %1159 = vmatpush1.msra.mxu0 0.0
    %1160 = vmatprep.subr.mxu0 0.0
    %1161 = vmatpush1.msra.mxu0 0.0
    %1162 = vmatprep.subr.mxu0 0.0
    %1163 = vmatpush1.msra.mxu0 0.0
    %1164 = vmatprep.subr.mxu0 0.0
    %1165 = vmatpush1.msra.mxu0 0.0
    %1166 = vmatprep.subr.mxu0 0.0
    %1167 = vmatpush1.msra.mxu0 0.0
    %1168 = vmatprep.subr.mxu0 0.0
    %1169 = vmatpush1.msra.mxu0 0.0
    %1170 = vmatprep.subr.mxu0 0.0
    %1171 = vmatpush1.msra.mxu0 0.0
    %1172 = vmatprep.mubr.f32.mxu0 0.0
    %1173 = vmatmul.mubr.f32.gmra.mrb[0].mxu0 %v946
    %v1174 = vpop.f32.mrb[0].mxu0
    %v1175 = vadd.f32 %v1086, %v1174
    %v1176 = vpop.f32.mrb[0].mxu0
    %v1177 = vadd.f32 %v1088, %v1176
    %1178 = vmatprep.mubr.f32.mxu0 0.0
    %1179 = vmatmul.mubr.f32.gmra.mrb[0].mxu0 %v947
    %v1180 = vpop.f32.mrb[0].mxu0
    %v1181 = vadd.f32 %v1092, %v1180
    %v1182 = vpop.f32.mrb[0].mxu0
    %v1183 = vadd.f32 %v1094, %v1182
    %1184 = vmatprep.mubr.f32.mxu0 0.0
    %1185 = vmatmul.mubr.f32.gmra.mrb[0].mxu0 %v948
    %v1186 = vpop.f32.mrb[0].mxu0
    %v1187 = vadd.f32 %v1098, %v1186
    %v1188 = vpop.f32.mrb[0].mxu0
    %v1189 = vadd.f32 %v1100, %v1188
    %1190 = vmatprep.mubr.f32.mxu0 0.0
    %1191 = vmatmul.mubr.f32.gmra.mrb[0].mxu0 %v949
    %v1192 = vpop.f32.mrb[0].mxu0
    %v1193 = vadd.f32 %v1104, %v1192
    %v1194 = vpop.f32.mrb[0].mxu0
    %v1195 = vadd.f32 %v1106, %v1194
    %1196 = vdwg.mxu0
    %v1197 = vld [vmem:[#allocation3 + $0x2] sm:$0xff]
    %v1198 = vld [vmem:[#allocation3 + $0xa] sm:$0xff]
    %v1199 = vld [vmem:[#allocation3 + $0x1a] sm:$0xff]
    %v1200 = vld [vmem:[#allocation3 + $0x22] sm:$0xff]
    %s1201 = scalar_lea.vmem [#allocation10], 512
    %v1202 = vld [vmem:[%s1201] sm:$0xff]
    %v1203 = vld [vmem:[%s1201 + $0x8] sm:$0xff]
    %v1204 = vld [vmem:[%s1201 + $0x10] sm:$0xff]
    %v1205 = vld [vmem:[%s1201 + $0x18] sm:$0xff]
    %v1206 = vld [vmem:[%s1201 + $0x20] sm:$0xff]
    %v1207 = vld [vmem:[%s1201 + $0x28] sm:$0xff]
    %v1208 = vld [vmem:[%s1201 + $0x30] sm:$0xff]
    %v1209 = vld [vmem:[%s1201 + $0x38] sm:$0xff]
    %v1210 = vld [vmem:[%s1201 + $0x40] sm:$0xff]
    %v1211 = vld [vmem:[%s1201 + $0x48] sm:$0xff]
    %v1212 = vld [vmem:[%s1201 + $0x50] sm:$0xff]
    %v1213 = vld [vmem:[%s1201 + $0x58] sm:$0xff]
    %v1214 = vld [vmem:[%s1201 + $0x60] sm:$0xff]
    %v1215 = vld [vmem:[%s1201 + $0x68] sm:$0xff]
    %v1216 = vld [vmem:[%s1201 + $0x70] sm:$0xff]
    %v1217 = vld [vmem:[%s1201 + $0x78] sm:$0xff]
    %v1218 = vld [vmem:[%s1201 + $0x80] sm:$0xff]
    %v1219 = vld [vmem:[%s1201 + $0x88] sm:$0xff]
    %v1220 = vld [vmem:[%s1201 + $0x90] sm:$0xff]
    %v1221 = vld [vmem:[%s1201 + $0x98] sm:$0xff]
    %v1222 = vld [vmem:[%s1201 + $0xa0] sm:$0xff]
    %v1223 = vld [vmem:[%s1201 + $0xa8] sm:$0xff]
    %v1224 = vld [vmem:[%s1201 + $0xb0] sm:$0xff]
    %v1225 = vld [vmem:[%s1201 + $0xb8] sm:$0xff]
    %v1226 = vld [vmem:[%s1201 + $0xc0] sm:$0xff]
    %v1227 = vld [vmem:[%s1201 + $0xc8] sm:$0xff]
    %v1228 = vld [vmem:[%s1201 + $0xd0] sm:$0xff]
    %v1229 = vld [vmem:[%s1201 + $0xd8] sm:$0xff]
    %v1230 = vld [vmem:[%s1201 + $0xe0] sm:$0xff]
    %v1231 = vld [vmem:[%s1201 + $0xe8] sm:$0xff]
    %v1232 = vld [vmem:[%s1201 + $0xf0] sm:$0xff]
    %v1233 = vld [vmem:[%s1201 + $0xf8] sm:$0xff]
    %1234 = vmatprep.subr.mxu0 %v1203
    %1235 = vmatpush1.msra.mxu0 %v1202
    %1236 = vmatprep.subr.mxu0 %v1205
    %1237 = vmatpush1.msra.mxu0 %v1204
    %1238 = vmatprep.subr.mxu0 %v1207
    %1239 = vmatpush1.msra.mxu0 %v1206
    %1240 = vmatprep.subr.mxu0 %v1209
    %1241 = vmatpush1.msra.mxu0 %v1208
    %1242 = vmatprep.subr.mxu0 %v1211
    %1243 = vmatpush1.msra.mxu0 %v1210
    %1244 = vmatprep.subr.mxu0 %v1213
    %1245 = vmatpush1.msra.mxu0 %v1212
    %1246 = vmatprep.subr.mxu0 %v1215
    %1247 = vmatpush1.msra.mxu0 %v1214
    %1248 = vmatprep.subr.mxu0 %v1217
    %1249 = vmatpush1.msra.mxu0 %v1216
    %1250 = vmatprep.subr.mxu0 %v1219
    %1251 = vmatpush1.msra.mxu0 %v1218
    %1252 = vmatprep.subr.mxu0 %v1221
    %1253 = vmatpush1.msra.mxu0 %v1220
    %1254 = vmatprep.subr.mxu0 %v1223
    %1255 = vmatpush1.msra.mxu0 %v1222
    %1256 = vmatprep.subr.mxu0 %v1225
    %1257 = vmatpush1.msra.mxu0 %v1224
    %1258 = vmatprep.subr.mxu0 %v1227
    %1259 = vmatpush1.msra.mxu0 %v1226
    %1260 = vmatprep.subr.mxu0 %v1229
    %1261 = vmatpush1.msra.mxu0 %v1228
    %1262 = vmatprep.subr.mxu0 %v1231
    %1263 = vmatpush1.msra.mxu0 %v1230
    %1264 = vmatprep.subr.mxu0 %v1233
    %1265 = vmatpush1.msra.mxu0 %v1232
    %1266 = vmatprep.subr.mxu0 0.0
    %1267 = vmatpush1.msra.mxu0 0.0
    %1268 = vmatprep.subr.mxu0 0.0
    %1269 = vmatpush1.msra.mxu0 0.0
    %1270 = vmatprep.subr.mxu0 0.0
    %1271 = vmatpush1.msra.mxu0 0.0
    %1272 = vmatprep.subr.mxu0 0.0
    %1273 = vmatpush1.msra.mxu0 0.0
    %1274 = vmatprep.subr.mxu0 0.0
    %1275 = vmatpush1.msra.mxu0 0.0
    %1276 = vmatprep.subr.mxu0 0.0
    %1277 = vmatpush1.msra.mxu0 0.0
    %1278 = vmatprep.subr.mxu0 0.0
    %1279 = vmatpush1.msra.mxu0 0.0
    %1280 = vmatprep.subr.mxu0 0.0
    %1281 = vmatpush1.msra.mxu0 0.0
    %1282 = vmatprep.subr.mxu0 0.0
    %1283 = vmatpush1.msra.mxu0 0.0
    %1284 = vmatprep.subr.mxu0 0.0
    %1285 = vmatpush1.msra.mxu0 0.0
    %1286 = vmatprep.subr.mxu0 0.0
    %1287 = vmatpush1.msra.mxu0 0.0
    %1288 = vmatprep.subr.mxu0 0.0
    %1289 = vmatpush1.msra.mxu0 0.0
    %1290 = vmatprep.subr.mxu0 0.0
    %1291 = vmatpush1.msra.mxu0 0.0
    %1292 = vmatprep.subr.mxu0 0.0
    %1293 = vmatpush1.msra.mxu0 0.0
    %1294 = vmatprep.subr.mxu0 0.0
    %1295 = vmatpush1.msra.mxu0 0.0
    %1296 = vmatprep.subr.mxu0 0.0
    %1297 = vmatpush1.msra.mxu0 0.0
    %1298 = vmatprep.mubr.f32.mxu0 0.0
    %1299 = vmatmul.mubr.f32.gmra.mrb[0].mxu0 %v1197
    %v1300 = vpop.f32.mrb[0].mxu0
    %v1301 = vadd.f32 0.0, %v1300
    %v1302 = vpop.f32.mrb[0].mxu0
    %v1303 = vadd.f32 0.0, %v1302
    %1304 = vmatprep.mubr.f32.mxu0 0.0
    %1305 = vmatmul.mubr.f32.gmra.mrb[0].mxu0 %v1198
    %v1306 = vpop.f32.mrb[0].mxu0
    %v1307 = vadd.f32 0.0, %v1306
    %v1308 = vpop.f32.mrb[0].mxu0
    %v1309 = vadd.f32 0.0, %v1308
    %1310 = vmatprep.mubr.f32.mxu0 0.0
    %1311 = vmatmul.mubr.f32.gmra.mrb[0].mxu0 %v1199
    %v1312 = vpop.f32.mrb[0].mxu0
    %v1313 = vadd.f32 0.0, %v1312
    %v1314 = vpop.f32.mrb[0].mxu0
    %v1315 = vadd.f32 0.0, %v1314
    %1316 = vmatprep.mubr.f32.mxu0 0.0
    %1317 = vmatmul.mubr.f32.gmra.mrb[0].mxu0 %v1200
    %v1318 = vpop.f32.mrb[0].mxu0
    %v1319 = vadd.f32 0.0, %v1318
    %v1320 = vpop.f32.mrb[0].mxu0
    %v1321 = vadd.f32 0.0, %v1320
    %1322 = vdwg.mxu0
    %v1323 = vadd.f32 %v1175, %v1301
    %v1324 = vadd.f32 %v1177, %v1303
    %v1325 = vadd.f32 %v1181, %v1307
    %v1326 = vadd.f32 %v1183, %v1309
    %v1327 = vadd.f32 %v1187, %v1313
    %v1328 = vadd.f32 %v1189, %v1315
    %v1329 = vadd.f32 %v1193, %v1319
    %v1330 = vadd.f32 %v1195, %v1321
    %v1331 = vld [vmem:[%s4] sm:$0x3]
    %v1333 = vlaneseq
    %v1334 = vshrl.u32 %v1333, 7
    %v1335 = vsub.s32 0, %v1334
    %v1336 = vrot.slane %v1331, %v1335
    %v1337 = vlaneseq
    %v1338 = vshrl.u32 %v1337, 7
    %v1339 = vsub.s32 1, %v1338
    %v1340 = vrot.slane %v1331, %v1339
    %v1343 = vadd.f32 %v1323, %v1336
    %v1344 = vadd.f32 %v1324, %v1340
    %v1345 = vadd.f32 %v1325, %v1336
    %v1346 = vadd.f32 %v1326, %v1340
    %v1347 = vadd.f32 %v1327, %v1336
    %v1348 = vadd.f32 %v1328, %v1340
    %v1349 = vadd.f32 %v1329, %v1336
    %v1350 = vadd.f32 %v1330, %v1340
    %v1351 = vmax.f32 %v1343, 0.0
    %v1352 = vmax.f32 %v1344, 0.0
    %v1353 = vmax.f32 %v1345, 0.0
    %v1354 = vmax.f32 %v1346, 0.0
    %v1355 = vmax.f32 %v1347, 0.0
    %v1356 = vmax.f32 %v1348, 0.0
    %v1357 = vmax.f32 %v1349, 0.0
    %v1358 = vmax.f32 %v1350, 0.0
    %1359 = vst [vmem:[#allocation4] sm:$0x3] 0.0
    %1360 = vst [vmem:[#allocation4 + $0x18] sm:$0x3] 0.0
    %1361 = vst [vmem:[#allocation4 + $0x12] sm:$0x3] 0.0
    %1362 = vst [vmem:[#allocation4 + $0x2a] sm:$0x3] 0.0
    %1363 = vst [vmem:[#allocation4 + $0x2] sm:$0xff] %v917
    %1364 = vst [vmem:[#allocation4 + $0xa] sm:$0xff] %v923
    %1365 = vst [vmem:[#allocation4 + $0x1a] sm:$0xff] %v929
    %1366 = vst [vmem:[#allocation4 + $0x22] sm:$0xff] %v935
    %v1367 = vld [vmem:[#allocation4] sm:$0xff]
    %v1368 = vld [vmem:[#allocation4 + $0x8] sm:$0xff]
    %v1369 = vld [vmem:[#allocation4 + $0x18] sm:$0xff]
    %v1370 = vld [vmem:[#allocation4 + $0x20] sm:$0xff]
    %v1371 = vld [vmem:[#allocation11] sm:$0xff]
    %v1372 = vld [vmem:[#allocation11 + $0x8] sm:$0xff]
    %v1373 = vld [vmem:[#allocation11 + $0x10] sm:$0xff]
    %v1374 = vld [vmem:[#allocation11 + $0x18] sm:$0xff]
    %v1375 = vld [vmem:[#allocation11 + $0x20] sm:$0xff]
    %v1376 = vld [vmem:[#allocation11 + $0x28] sm:$0xff]
    %v1377 = vld [vmem:[#allocation11 + $0x30] sm:$0xff]
    %v1378 = vld [vmem:[#allocation11 + $0x38] sm:$0xff]
    %v1379 = vld [vmem:[#allocation11 + $0x40] sm:$0xff]
    %v1380 = vld [vmem:[#allocation11 + $0x48] sm:$0xff]
    %v1381 = vld [vmem:[#allocation11 + $0x50] sm:$0xff]
    %v1382 = vld [vmem:[#allocation11 + $0x58] sm:$0xff]
    %v1383 = vld [vmem:[#allocation11 + $0x60] sm:$0xff]
    %v1384 = vld [vmem:[#allocation11 + $0x68] sm:$0xff]
    %v1385 = vld [vmem:[#allocation11 + $0x70] sm:$0xff]
    %v1386 = vld [vmem:[#allocation11 + $0x78] sm:$0xff]
    %v1387 = vld [vmem:[#allocation11 + $0x80] sm:$0xff]
    %v1388 = vld [vmem:[#allocation11 + $0x88] sm:$0xff]
    %v1389 = vld [vmem:[#allocation11 + $0x90] sm:$0xff]
    %v1390 = vld [vmem:[#allocation11 + $0x98] sm:$0xff]
    %v1391 = vld [vmem:[#allocation11 + $0xa0] sm:$0xff]
    %v1392 = vld [vmem:[#allocation11 + $0xa8] sm:$0xff]
    %v1393 = vld [vmem:[#allocation11 + $0xb0] sm:$0xff]
    %v1394 = vld [vmem:[#allocation11 + $0xb8] sm:$0xff]
    %v1395 = vld [vmem:[#allocation11 + $0xc0] sm:$0xff]
    %v1396 = vld [vmem:[#allocation11 + $0xc8] sm:$0xff]
    %v1397 = vld [vmem:[#allocation11 + $0xd0] sm:$0xff]
    %v1398 = vld [vmem:[#allocation11 + $0xd8] sm:$0xff]
    %v1399 = vld [vmem:[#allocation11 + $0xe0] sm:$0xff]
    %v1400 = vld [vmem:[#allocation11 + $0xe8] sm:$0xff]
    %v1401 = vld [vmem:[#allocation11 + $0xf0] sm:$0xff]
    %v1402 = vld [vmem:[#allocation11 + $0xf8] sm:$0xff]
    %v1403 = vld [vmem:[#allocation4 + $0x1] sm:$0xff]
    %v1404 = vld [vmem:[#allocation4 + $0x9] sm:$0xff]
    %v1405 = vld [vmem:[#allocation4 + $0x19] sm:$0xff]
    %v1406 = vld [vmem:[#allocation4 + $0x21] sm:$0xff]
    %s1407 = scalar_lea.vmem [#allocation11], 256
    %v1408 = vld [vmem:[%s1407] sm:$0xff]
    %v1409 = vld [vmem:[%s1407 + $0x8] sm:$0xff]
    %v1410 = vld [vmem:[%s1407 + $0x10] sm:$0xff]
    %v1411 = vld [vmem:[%s1407 + $0x18] sm:$0xff]
    %v1412 = vld [vmem:[%s1407 + $0x20] sm:$0xff]
    %v1413 = vld [vmem:[%s1407 + $0x28] sm:$0xff]
    %v1414 = vld [vmem:[%s1407 + $0x30] sm:$0xff]
    %v1415 = vld [vmem:[%s1407 + $0x38] sm:$0xff]
    %v1416 = vld [vmem:[%s1407 + $0x40] sm:$0xff]
    %v1417 = vld [vmem:[%s1407 + $0x48] sm:$0xff]
    %v1418 = vld [vmem:[%s1407 + $0x50] sm:$0xff]
    %v1419 = vld [vmem:[%s1407 + $0x58] sm:$0xff]
    %v1420 = vld [vmem:[%s1407 + $0x60] sm:$0xff]
    %v1421 = vld [vmem:[%s1407 + $0x68] sm:$0xff]
    %v1422 = vld [vmem:[%s1407 + $0x70] sm:$0xff]
    %v1423 = vld [vmem:[%s1407 + $0x78] sm:$0xff]
    %v1424 = vld [vmem:[%s1407 + $0x80] sm:$0xff]
    %v1425 = vld [vmem:[%s1407 + $0x88] sm:$0xff]
    %v1426 = vld [vmem:[%s1407 + $0x90] sm:$0xff]
    %v1427 = vld [vmem:[%s1407 + $0x98] sm:$0xff]
    %v1428 = vld [vmem:[%s1407 + $0xa0] sm:$0xff]
    %v1429 = vld [vmem:[%s1407 + $0xa8] sm:$0xff]
    %v1430 = vld [vmem:[%s1407 + $0xb0] sm:$0xff]
    %v1431 = vld [vmem:[%s1407 + $0xb8] sm:$0xff]
    %v1432 = vld [vmem:[%s1407 + $0xc0] sm:$0xff]
    %v1433 = vld [vmem:[%s1407 + $0xc8] sm:$0xff]
    %v1434 = vld [vmem:[%s1407 + $0xd0] sm:$0xff]
    %v1435 = vld [vmem:[%s1407 + $0xd8] sm:$0xff]
    %v1436 = vld [vmem:[%s1407 + $0xe0] sm:$0xff]
    %v1437 = vld [vmem:[%s1407 + $0xe8] sm:$0xff]
    %v1438 = vld [vmem:[%s1407 + $0xf0] sm:$0xff]
    %v1439 = vld [vmem:[%s1407 + $0xf8] sm:$0xff]
    %1440 = vmatprep.subr.mxu0 %v1409
    %1441 = vmatpush1.msra.mxu0 %v1408
    %1442 = vmatprep.subr.mxu0 %v1411
    %1443 = vmatpush1.msra.mxu0 %v1410
    %1444 = vmatprep.subr.mxu0 %v1413
    %1445 = vmatpush1.msra.mxu0 %v1412
    %1446 = vmatprep.subr.mxu0 %v1415
    %1447 = vmatpush1.msra.mxu0 %v1414
    %1448 = vmatprep.subr.mxu0 %v1417
    %1449 = vmatpush1.msra.mxu0 %v1416
    %1450 = vmatprep.subr.mxu0 %v1419
    %1451 = vmatpush1.msra.mxu0 %v1418
    %1452 = vmatprep.subr.mxu0 %v1421
    %1453 = vmatpush1.msra.mxu0 %v1420
    %1454 = vmatprep.subr.mxu0 %v1423
    %1455 = vmatpush1.msra.mxu0 %v1422
    %1456 = vmatprep.subr.mxu0 %v1425
    %1457 = vmatpush1.msra.mxu0 %v1424
    %1458 = vmatprep.subr.mxu0 %v1427
    %1459 = vmatpush1.msra.mxu0 %v1426
    %1460 = vmatprep.subr.mxu0 %v1429
    %1461 = vmatpush1.msra.mxu0 %v1428
    %1462 = vmatprep.subr.mxu0 %v1431
    %1463 = vmatpush1.msra.mxu0 %v1430
    %1464 = vmatprep.subr.mxu0 %v1433
    %1465 = vmatpush1.msra.mxu0 %v1432
    %1466 = vmatprep.subr.mxu0 %v1435
    %1467 = vmatpush1.msra.mxu0 %v1434
    %1468 = vmatprep.subr.mxu0 %v1437
    %1469 = vmatpush1.msra.mxu0 %v1436
    %1470 = vmatprep.subr.mxu0 %v1439
    %1471 = vmatpush1.msra.mxu0 %v1438
    %1472 = vmatprep.subr.mxu0 0.0
    %1473 = vmatpush1.msra.mxu0 0.0
    %1474 = vmatprep.subr.mxu0 0.0
    %1475 = vmatpush1.msra.mxu0 0.0
    %1476 = vmatprep.subr.mxu0 0.0
    %1477 = vmatpush1.msra.mxu0 0.0
    %1478 = vmatprep.subr.mxu0 0.0
    %1479 = vmatpush1.msra.mxu0 0.0
    %1480 = vmatprep.subr.mxu0 0.0
    %1481 = vmatpush1.msra.mxu0 0.0
    %1482 = vmatprep.subr.mxu0 0.0
    %1483 = vmatpush1.msra.mxu0 0.0
    %1484 = vmatprep.subr.mxu0 0.0
    %1485 = vmatpush1.msra.mxu0 0.0
    %1486 = vmatprep.subr.mxu0 0.0
    %1487 = vmatpush1.msra.mxu0 0.0
    %1488 = vmatprep.subr.mxu0 0.0
    %1489 = vmatpush1.msra.mxu0 0.0
    %1490 = vmatprep.subr.mxu0 0.0
    %1491 = vmatpush1.msra.mxu0 0.0
    %1492 = vmatprep.subr.mxu0 0.0
    %1493 = vmatpush1.msra.mxu0 0.0
    %1494 = vmatprep.subr.mxu0 0.0
    %1495 = vmatpush1.msra.mxu0 0.0
    %1496 = vmatprep.subr.mxu0 0.0
    %1497 = vmatpush1.msra.mxu0 0.0
    %1498 = vmatprep.subr.mxu0 0.0
    %1499 = vmatpush1.msra.mxu0 0.0
    %1500 = vmatprep.subr.mxu0 0.0
    %1501 = vmatpush1.msra.mxu0 0.0
    %1502 = vmatprep.subr.mxu0 0.0
    %1503 = vmatpush1.msra.mxu0 0.0
    %1504 = vmatprep.mubr.f32.mxu0 0.0
    %1505 = vmatmul.mubr.f32.gmra.mrb[0].mxu0 %v1403
    %v1506 = vpop.f32.mrb[0].mxu0
    %v1507 = vadd.f32 0.0, %v1506
    %v1508 = vpop.f32.mrb[0].mxu0
    %v1509 = vadd.f32 0.0, %v1508
    %1510 = vmatprep.mubr.f32.mxu0 0.0
    %1511 = vmatmul.mubr.f32.gmra.mrb[0].mxu0 %v1404
    %v1512 = vpop.f32.mrb[0].mxu0
    %v1513 = vadd.f32 0.0, %v1512
    %v1514 = vpop.f32.mrb[0].mxu0
    %v1515 = vadd.f32 0.0, %v1514
    %1516 = vmatprep.mubr.f32.mxu0 0.0
    %1517 = vmatmul.mubr.f32.gmra.mrb[0].mxu0 %v1405
    %v1518 = vpop.f32.mrb[0].mxu0
    %v1519 = vadd.f32 0.0, %v1518
    %v1520 = vpop.f32.mrb[0].mxu0
    %v1521 = vadd.f32 0.0, %v1520
    %1522 = vmatprep.mubr.f32.mxu0 0.0
    %1523 = vmatmul.mubr.f32.gmra.mrb[0].mxu0 %v1406
    %v1524 = vpop.f32.mrb[0].mxu0
    %v1525 = vadd.f32 0.0, %v1524
    %v1526 = vpop.f32.mrb[0].mxu0
    %v1527 = vadd.f32 0.0, %v1526
    %1528 = vdwg.mxu0
    %1529 = vmatprep.subr.mxu0 %v1372
    %1530 = vmatpush1.msra.mxu0 %v1371
    %1531 = vmatprep.subr.mxu0 %v1374
    %1532 = vmatpush1.msra.mxu0 %v1373
    %1533 = vmatprep.subr.mxu0 %v1376
    %1534 = vmatpush1.msra.mxu0 %v1375
    %1535 = vmatprep.subr.mxu0 %v1378
    %1536 = vmatpush1.msra.mxu0 %v1377
    %1537 = vmatprep.subr.mxu0 %v1380
    %1538 = vmatpush1.msra.mxu0 %v1379
    %1539 = vmatprep.subr.mxu0 %v1382
    %1540 = vmatpush1.msra.mxu0 %v1381
    %1541 = vmatprep.subr.mxu0 %v1384
    %1542 = vmatpush1.msra.mxu0 %v1383
    %1543 = vmatprep.subr.mxu0 %v1386
    %1544 = vmatpush1.msra.mxu0 %v1385
    %1545 = vmatprep.subr.mxu0 %v1388
    %1546 = vmatpush1.msra.mxu0 %v1387
    %1547 = vmatprep.subr.mxu0 %v1390
    %1548 = vmatpush1.msra.mxu0 %v1389
    %1549 = vmatprep.subr.mxu0 %v1392
    %1550 = vmatpush1.msra.mxu0 %v1391
    %1551 = vmatprep.subr.mxu0 %v1394
    %1552 = vmatpush1.msra.mxu0 %v1393
    %1553 = vmatprep.subr.mxu0 %v1396
    %1554 = vmatpush1.msra.mxu0 %v1395
    %1555 = vmatprep.subr.mxu0 %v1398
    %1556 = vmatpush1.msra.mxu0 %v1397
    %1557 = vmatprep.subr.mxu0 %v1400
    %1558 = vmatpush1.msra.mxu0 %v1399
    %1559 = vmatprep.subr.mxu0 %v1402
    %1560 = vmatpush1.msra.mxu0 %v1401
    %1561 = vmatprep.subr.mxu0 0.0
    %1562 = vmatpush1.msra.mxu0 0.0
    %1563 = vmatprep.subr.mxu0 0.0
    %1564 = vmatpush1.msra.mxu0 0.0
    %1565 = vmatprep.subr.mxu0 0.0
    %1566 = vmatpush1.msra.mxu0 0.0
    %1567 = vmatprep.subr.mxu0 0.0
    %1568 = vmatpush1.msra.mxu0 0.0
    %1569 = vmatprep.subr.mxu0 0.0
    %1570 = vmatpush1.msra.mxu0 0.0
    %1571 = vmatprep.subr.mxu0 0.0
    %1572 = vmatpush1.msra.mxu0 0.0
    %1573 = vmatprep.subr.mxu0 0.0
    %1574 = vmatpush1.msra.mxu0 0.0
    %1575 = vmatprep.subr.mxu0 0.0
    %1576 = vmatpush1.msra.mxu0 0.0
    %1577 = vmatprep.subr.mxu0 0.0
    %1578 = vmatpush1.msra.mxu0 0.0
    %1579 = vmatprep.subr.mxu0 0.0
    %1580 = vmatpush1.msra.mxu0 0.0
    %1581 = vmatprep.subr.mxu0 0.0
    %1582 = vmatpush1.msra.mxu0 0.0
    %1583 = vmatprep.subr.mxu0 0.0
    %1584 = vmatpush1.msra.mxu0 0.0
    %1585 = vmatprep.subr.mxu0 0.0
    %1586 = vmatpush1.msra.mxu0 0.0
    %1587 = vmatprep.subr.mxu0 0.0
    %1588 = vmatpush1.msra.mxu0 0.0
    %1589 = vmatprep.subr.mxu0 0.0
    %1590 = vmatpush1.msra.mxu0 0.0
    %1591 = vmatprep.subr.mxu0 0.0
    %1592 = vmatpush1.msra.mxu0 0.0
    %1593 = vmatprep.mubr.f32.mxu0 0.0
    %1594 = vmatmul.mubr.f32.gmra.mrb[0].mxu0 %v1367
    %v1595 = vpop.f32.mrb[0].mxu0
    %v1596 = vadd.f32 %v1507, %v1595
    %v1597 = vpop.f32.mrb[0].mxu0
    %v1598 = vadd.f32 %v1509, %v1597
    %1599 = vmatprep.mubr.f32.mxu0 0.0
    %1600 = vmatmul.mubr.f32.gmra.mrb[0].mxu0 %v1368
    %v1601 = vpop.f32.mrb[0].mxu0
    %v1602 = vadd.f32 %v1513, %v1601
    %v1603 = vpop.f32.mrb[0].mxu0
    %v1604 = vadd.f32 %v1515, %v1603
    %1605 = vmatprep.mubr.f32.mxu0 0.0
    %1606 = vmatmul.mubr.f32.gmra.mrb[0].mxu0 %v1369
    %v1607 = vpop.f32.mrb[0].mxu0
    %v1608 = vadd.f32 %v1519, %v1607
    %v1609 = vpop.f32.mrb[0].mxu0
    %v1610 = vadd.f32 %v1521, %v1609
    %1611 = vmatprep.mubr.f32.mxu0 0.0
    %1612 = vmatmul.mubr.f32.gmra.mrb[0].mxu0 %v1370
    %v1613 = vpop.f32.mrb[0].mxu0
    %v1614 = vadd.f32 %v1525, %v1613
    %v1615 = vpop.f32.mrb[0].mxu0
    %v1616 = vadd.f32 %v1527, %v1615
    %1617 = vdwg.mxu0
    %v1618 = vld [vmem:[#allocation4 + $0x2] sm:$0xff]
    %v1619 = vld [vmem:[#allocation4 + $0xa] sm:$0xff]
    %v1620 = vld [vmem:[#allocation4 + $0x1a] sm:$0xff]
    %v1621 = vld [vmem:[#allocation4 + $0x22] sm:$0xff]
    %s1622 = scalar_lea.vmem [#allocation11], 512
    %v1623 = vld [vmem:[%s1622] sm:$0xff]
    %v1624 = vld [vmem:[%s1622 + $0x8] sm:$0xff]
    %v1625 = vld [vmem:[%s1622 + $0x10] sm:$0xff]
    %v1626 = vld [vmem:[%s1622 + $0x18] sm:$0xff]
    %v1627 = vld [vmem:[%s1622 + $0x20] sm:$0xff]
    %v1628 = vld [vmem:[%s1622 + $0x28] sm:$0xff]
    %v1629 = vld [vmem:[%s1622 + $0x30] sm:$0xff]
    %v1630 = vld [vmem:[%s1622 + $0x38] sm:$0xff]
    %v1631 = vld [vmem:[%s1622 + $0x40] sm:$0xff]
    %v1632 = vld [vmem:[%s1622 + $0x48] sm:$0xff]
    %v1633 = vld [vmem:[%s1622 + $0x50] sm:$0xff]
    %v1634 = vld [vmem:[%s1622 + $0x58] sm:$0xff]
    %v1635 = vld [vmem:[%s1622 + $0x60] sm:$0xff]
    %v1636 = vld [vmem:[%s1622 + $0x68] sm:$0xff]
    %v1637 = vld [vmem:[%s1622 + $0x70] sm:$0xff]
    %v1638 = vld [vmem:[%s1622 + $0x78] sm:$0xff]
    %v1639 = vld [vmem:[%s1622 + $0x80] sm:$0xff]
    %v1640 = vld [vmem:[%s1622 + $0x88] sm:$0xff]
    %v1641 = vld [vmem:[%s1622 + $0x90] sm:$0xff]
    %v1642 = vld [vmem:[%s1622 + $0x98] sm:$0xff]
    %v1643 = vld [vmem:[%s1622 + $0xa0] sm:$0xff]
    %v1644 = vld [vmem:[%s1622 + $0xa8] sm:$0xff]
    %v1645 = vld [vmem:[%s1622 + $0xb0] sm:$0xff]
    %v1646 = vld [vmem:[%s1622 + $0xb8] sm:$0xff]
    %v1647 = vld [vmem:[%s1622 + $0xc0] sm:$0xff]
    %v1648 = vld [vmem:[%s1622 + $0xc8] sm:$0xff]
    %v1649 = vld [vmem:[%s1622 + $0xd0] sm:$0xff]
    %v1650 = vld [vmem:[%s1622 + $0xd8] sm:$0xff]
    %v1651 = vld [vmem:[%s1622 + $0xe0] sm:$0xff]
    %v1652 = vld [vmem:[%s1622 + $0xe8] sm:$0xff]
    %v1653 = vld [vmem:[%s1622 + $0xf0] sm:$0xff]
    %v1654 = vld [vmem:[%s1622 + $0xf8] sm:$0xff]
    %1655 = vmatprep.subr.mxu0 %v1624
    %1656 = vmatpush1.msra.mxu0 %v1623
    %1657 = vmatprep.subr.mxu0 %v1626
    %1658 = vmatpush1.msra.mxu0 %v1625
    %1659 = vmatprep.subr.mxu0 %v1628
    %1660 = vmatpush1.msra.mxu0 %v1627
    %1661 = vmatprep.subr.mxu0 %v1630
    %1662 = vmatpush1.msra.mxu0 %v1629
    %1663 = vmatprep.subr.mxu0 %v1632
    %1664 = vmatpush1.msra.mxu0 %v1631
    %1665 = vmatprep.subr.mxu0 %v1634
    %1666 = vmatpush1.msra.mxu0 %v1633
    %1667 = vmatprep.subr.mxu0 %v1636
    %1668 = vmatpush1.msra.mxu0 %v1635
    %1669 = vmatprep.subr.mxu0 %v1638
    %1670 = vmatpush1.msra.mxu0 %v1637
    %1671 = vmatprep.subr.mxu0 %v1640
    %1672 = vmatpush1.msra.mxu0 %v1639
    %1673 = vmatprep.subr.mxu0 %v1642
    %1674 = vmatpush1.msra.mxu0 %v1641
    %1675 = vmatprep.subr.mxu0 %v1644
    %1676 = vmatpush1.msra.mxu0 %v1643
    %1677 = vmatprep.subr.mxu0 %v1646
    %1678 = vmatpush1.msra.mxu0 %v1645
    %1679 = vmatprep.subr.mxu0 %v1648
    %1680 = vmatpush1.msra.mxu0 %v1647
    %1681 = vmatprep.subr.mxu0 %v1650
    %1682 = vmatpush1.msra.mxu0 %v1649
    %1683 = vmatprep.subr.mxu0 %v1652
    %1684 = vmatpush1.msra.mxu0 %v1651
    %1685 = vmatprep.subr.mxu0 %v1654
    %1686 = vmatpush1.msra.mxu0 %v1653
    %1687 = vmatprep.subr.mxu0 0.0
    %1688 = vmatpush1.msra.mxu0 0.0
    %1689 = vmatprep.subr.mxu0 0.0
    %1690 = vmatpush1.msra.mxu0 0.0
    %1691 = vmatprep.subr.mxu0 0.0
    %1692 = vmatpush1.msra.mxu0 0.0
    %1693 = vmatprep.subr.mxu0 0.0
    %1694 = vmatpush1.msra.mxu0 0.0
    %1695 = vmatprep.subr.mxu0 0.0
    %1696 = vmatpush1.msra.mxu0 0.0
    %1697 = vmatprep.subr.mxu0 0.0
    %1698 = vmatpush1.msra.mxu0 0.0
    %1699 = vmatprep.subr.mxu0 0.0
    %1700 = vmatpush1.msra.mxu0 0.0
    %1701 = vmatprep.subr.mxu0 0.0
    %1702 = vmatpush1.msra.mxu0 0.0
    %1703 = vmatprep.subr.mxu0 0.0
    %1704 = vmatpush1.msra.mxu0 0.0
    %1705 = vmatprep.subr.mxu0 0.0
    %1706 = vmatpush1.msra.mxu0 0.0
    %1707 = vmatprep.subr.mxu0 0.0
    %1708 = vmatpush1.msra.mxu0 0.0
    %1709 = vmatprep.subr.mxu0 0.0
    %1710 = vmatpush1.msra.mxu0 0.0
    %1711 = vmatprep.subr.mxu0 0.0
    %1712 = vmatpush1.msra.mxu0 0.0
    %1713 = vmatprep.subr.mxu0 0.0
    %1714 = vmatpush1.msra.mxu0 0.0
    %1715 = vmatprep.subr.mxu0 0.0
    %1716 = vmatpush1.msra.mxu0 0.0
    %1717 = vmatprep.subr.mxu0 0.0
    %1718 = vmatpush1.msra.mxu0 0.0
    %1719 = vmatprep.mubr.f32.mxu0 0.0
    %1720 = vmatmul.mubr.f32.gmra.mrb[0].mxu0 %v1618
    %v1721 = vpop.f32.mrb[0].mxu0
    %v1722 = vadd.f32 0.0, %v1721
    %v1723 = vpop.f32.mrb[0].mxu0
    %v1724 = vadd.f32 0.0, %v1723
    %1725 = vmatprep.mubr.f32.mxu0 0.0
    %1726 = vmatmul.mubr.f32.gmra.mrb[0].mxu0 %v1619
    %v1727 = vpop.f32.mrb[0].mxu0
    %v1728 = vadd.f32 0.0, %v1727
    %v1729 = vpop.f32.mrb[0].mxu0
    %v1730 = vadd.f32 0.0, %v1729
    %1731 = vmatprep.mubr.f32.mxu0 0.0
    %1732 = vmatmul.mubr.f32.gmra.mrb[0].mxu0 %v1620
    %v1733 = vpop.f32.mrb[0].mxu0
    %v1734 = vadd.f32 0.0, %v1733
    %v1735 = vpop.f32.mrb[0].mxu0
    %v1736 = vadd.f32 0.0, %v1735
    %1737 = vmatprep.mubr.f32.mxu0 0.0
    %1738 = vmatmul.mubr.f32.gmra.mrb[0].mxu0 %v1621
    %v1739 = vpop.f32.mrb[0].mxu0
    %v1740 = vadd.f32 0.0, %v1739
    %v1741 = vpop.f32.mrb[0].mxu0
    %v1742 = vadd.f32 0.0, %v1741
    %1743 = vdwg.mxu0
    %v1744 = vadd.f32 %v1596, %v1722
    %v1745 = vadd.f32 %v1598, %v1724
    %v1746 = vadd.f32 %v1602, %v1728
    %v1747 = vadd.f32 %v1604, %v1730
    %v1748 = vadd.f32 %v1608, %v1734
    %v1749 = vadd.f32 %v1610, %v1736
    %v1750 = vadd.f32 %v1614, %v1740
    %v1751 = vadd.f32 %v1616, %v1742
    %v1752 = vld [vmem:[#allocation4 + $0x3] sm:$0xff]
    %v1753 = vld [vmem:[#allocation4 + $0xb] sm:$0xff]
    %v1754 = vld [vmem:[#allocation4 + $0x1b] sm:$0xff]
    %v1755 = vld [vmem:[#allocation4 + $0x23] sm:$0xff]
    %s1756 = scalar_lea.vmem [#allocation11], 768
    %v1757 = vld [vmem:[%s1756] sm:$0xff]
    %v1758 = vld [vmem:[%s1756 + $0x8] sm:$0xff]
    %v1759 = vld [vmem:[%s1756 + $0x10] sm:$0xff]
    %v1760 = vld [vmem:[%s1756 + $0x18] sm:$0xff]
    %v1761 = vld [vmem:[%s1756 + $0x20] sm:$0xff]
    %v1762 = vld [vmem:[%s1756 + $0x28] sm:$0xff]
    %v1763 = vld [vmem:[%s1756 + $0x30] sm:$0xff]
    %v1764 = vld [vmem:[%s1756 + $0x38] sm:$0xff]
    %v1765 = vld [vmem:[%s1756 + $0x40] sm:$0xff]
    %v1766 = vld [vmem:[%s1756 + $0x48] sm:$0xff]
    %v1767 = vld [vmem:[%s1756 + $0x50] sm:$0xff]
    %v1768 = vld [vmem:[%s1756 + $0x58] sm:$0xff]
    %v1769 = vld [vmem:[%s1756 + $0x60] sm:$0xff]
    %v1770 = vld [vmem:[%s1756 + $0x68] sm:$0xff]
    %v1771 = vld [vmem:[%s1756 + $0x70] sm:$0xff]
    %v1772 = vld [vmem:[%s1756 + $0x78] sm:$0xff]
    %v1773 = vld [vmem:[%s1756 + $0x80] sm:$0xff]
    %v1774 = vld [vmem:[%s1756 + $0x88] sm:$0xff]
    %v1775 = vld [vmem:[%s1756 + $0x90] sm:$0xff]
    %v1776 = vld [vmem:[%s1756 + $0x98] sm:$0xff]
    %v1777 = vld [vmem:[%s1756 + $0xa0] sm:$0xff]
    %v1778 = vld [vmem:[%s1756 + $0xa8] sm:$0xff]
    %v1779 = vld [vmem:[%s1756 + $0xb0] sm:$0xff]
    %v1780 = vld [vmem:[%s1756 + $0xb8] sm:$0xff]
    %v1781 = vld [vmem:[%s1756 + $0xc0] sm:$0xff]
    %v1782 = vld [vmem:[%s1756 + $0xc8] sm:$0xff]
    %v1783 = vld [vmem:[%s1756 + $0xd0] sm:$0xff]
    %v1784 = vld [vmem:[%s1756 + $0xd8] sm:$0xff]
    %v1785 = vld [vmem:[%s1756 + $0xe0] sm:$0xff]
    %v1786 = vld [vmem:[%s1756 + $0xe8] sm:$0xff]
    %v1787 = vld [vmem:[%s1756 + $0xf0] sm:$0xff]
    %v1788 = vld [vmem:[%s1756 + $0xf8] sm:$0xff]
    %1789 = vmatprep.subr.mxu0 %v1758
    %1790 = vmatpush1.msra.mxu0 %v1757
    %1791 = vmatprep.subr.mxu0 %v1760
    %1792 = vmatpush1.msra.mxu0 %v1759
    %1793 = vmatprep.subr.mxu0 %v1762
    %1794 = vmatpush1.msra.mxu0 %v1761
    %1795 = vmatprep.subr.mxu0 %v1764
    %1796 = vmatpush1.msra.mxu0 %v1763
    %1797 = vmatprep.subr.mxu0 %v1766
    %1798 = vmatpush1.msra.mxu0 %v1765
    %1799 = vmatprep.subr.mxu0 %v1768
    %1800 = vmatpush1.msra.mxu0 %v1767
    %1801 = vmatprep.subr.mxu0 %v1770
    %1802 = vmatpush1.msra.mxu0 %v1769
    %1803 = vmatprep.subr.mxu0 %v1772
    %1804 = vmatpush1.msra.mxu0 %v1771
    %1805 = vmatprep.subr.mxu0 %v1774
    %1806 = vmatpush1.msra.mxu0 %v1773
    %1807 = vmatprep.subr.mxu0 %v1776
    %1808 = vmatpush1.msra.mxu0 %v1775
    %1809 = vmatprep.subr.mxu0 %v1778
    %1810 = vmatpush1.msra.mxu0 %v1777
    %1811 = vmatprep.subr.mxu0 %v1780
    %1812 = vmatpush1.msra.mxu0 %v1779
    %1813 = vmatprep.subr.mxu0 %v1782
    %1814 = vmatpush1.msra.mxu0 %v1781
    %1815 = vmatprep.subr.mxu0 %v1784
    %1816 = vmatpush1.msra.mxu0 %v1783
    %1817 = vmatprep.subr.mxu0 %v1786
    %1818 = vmatpush1.msra.mxu0 %v1785
    %1819 = vmatprep.subr.mxu0 %v1788
    %1820 = vmatpush1.msra.mxu0 %v1787
    %1821 = vmatprep.subr.mxu0 0.0
    %1822 = vmatpush1.msra.mxu0 0.0
    %1823 = vmatprep.subr.mxu0 0.0
    %1824 = vmatpush1.msra.mxu0 0.0
    %1825 = vmatprep.subr.mxu0 0.0
    %1826 = vmatpush1.msra.mxu0 0.0
    %1827 = vmatprep.subr.mxu0 0.0
    %1828 = vmatpush1.msra.mxu0 0.0
    %1829 = vmatprep.subr.mxu0 0.0
    %1830 = vmatpush1.msra.mxu0 0.0
    %1831 = vmatprep.subr.mxu0 0.0
    %1832 = vmatpush1.msra.mxu0 0.0
    %1833 = vmatprep.subr.mxu0 0.0
    %1834 = vmatpush1.msra.mxu0 0.0
    %1835 = vmatprep.subr.mxu0 0.0
    %1836 = vmatpush1.msra.mxu0 0.0
    %1837 = vmatprep.subr.mxu0 0.0
    %1838 = vmatpush1.msra.mxu0 0.0
    %1839 = vmatprep.subr.mxu0 0.0
    %1840 = vmatpush1.msra.mxu0 0.0
    %1841 = vmatprep.subr.mxu0 0.0
    %1842 = vmatpush1.msra.mxu0 0.0
    %1843 = vmatprep.subr.mxu0 0.0
    %1844 = vmatpush1.msra.mxu0 0.0
    %1845 = vmatprep.subr.mxu0 0.0
    %1846 = vmatpush1.msra.mxu0 0.0
    %1847 = vmatprep.subr.mxu0 0.0
    %1848 = vmatpush1.msra.mxu0 0.0
    %1849 = vmatprep.subr.mxu0 0.0
    %1850 = vmatpush1.msra.mxu0 0.0
    %1851 = vmatprep.subr.mxu0 0.0
    %1852 = vmatpush1.msra.mxu0 0.0
    %1853 = vmatprep.mubr.f32.mxu0 0.0
    %1854 = vmatmul.mubr.f32.gmra.mrb[0].mxu0 %v1752
    %v1855 = vpop.f32.mrb[0].mxu0
    %v1856 = vadd.f32 0.0, %v1855
    %v1857 = vpop.f32.mrb[0].mxu0
    %v1858 = vadd.f32 0.0, %v1857
    %1859 = vmatprep.mubr.f32.mxu0 0.0
    %1860 = vmatmul.mubr.f32.gmra.mrb[0].mxu0 %v1753
    %v1861 = vpop.f32.mrb[0].mxu0
    %v1862 = vadd.f32 0.0, %v1861
    %v1863 = vpop.f32.mrb[0].mxu0
    %v1864 = vadd.f32 0.0, %v1863
    %1865 = vmatprep.mubr.f32.mxu0 0.0
    %1866 = vmatmul.mubr.f32.gmra.mrb[0].mxu0 %v1754
    %v1867 = vpop.f32.mrb[0].mxu0
    %v1868 = vadd.f32 0.0, %v1867
    %v1869 = vpop.f32.mrb[0].mxu0
    %v1870 = vadd.f32 0.0, %v1869
    %1871 = vmatprep.mubr.f32.mxu0 0.0
    %1872 = vmatmul.mubr.f32.gmra.mrb[0].mxu0 %v1755
    %v1873 = vpop.f32.mrb[0].mxu0
    %v1874 = vadd.f32 0.0, %v1873
    %v1875 = vpop.f32.mrb[0].mxu0
    %v1876 = vadd.f32 0.0, %v1875
    %1877 = vdwg.mxu0
    %v1878 = vadd.f32 %v1744, %v1856
    %v1879 = vadd.f32 %v1745, %v1858
    %v1880 = vadd.f32 %v1746, %v1862
    %v1881 = vadd.f32 %v1747, %v1864
    %v1882 = vadd.f32 %v1748, %v1868
    %v1883 = vadd.f32 %v1749, %v1870
    %v1884 = vadd.f32 %v1750, %v1874
    %v1885 = vadd.f32 %v1751, %v1876
    %v1886 = vld [vmem:[#allocation4 + $0x4] sm:$0xff]
    %v1887 = vld [vmem:[#allocation4 + $0xc] sm:$0xff]
    %v1888 = vld [vmem:[#allocation4 + $0x1c] sm:$0xff]
    %v1889 = vld [vmem:[#allocation4 + $0x24] sm:$0xff]
    %s1890 = scalar_lea.vmem [#allocation11], 1024
    %v1891 = vld [vmem:[%s1890] sm:$0xff]
    %v1892 = vld [vmem:[%s1890 + $0x8] sm:$0xff]
    %v1893 = vld [vmem:[%s1890 + $0x10] sm:$0xff]
    %v1894 = vld [vmem:[%s1890 + $0x18] sm:$0xff]
    %v1895 = vld [vmem:[%s1890 + $0x20] sm:$0xff]
    %v1896 = vld [vmem:[%s1890 + $0x28] sm:$0xff]
    %v1897 = vld [vmem:[%s1890 + $0x30] sm:$0xff]
    %v1898 = vld [vmem:[%s1890 + $0x38] sm:$0xff]
    %v1899 = vld [vmem:[%s1890 + $0x40] sm:$0xff]
    %v1900 = vld [vmem:[%s1890 + $0x48] sm:$0xff]
    %v1901 = vld [vmem:[%s1890 + $0x50] sm:$0xff]
    %v1902 = vld [vmem:[%s1890 + $0x58] sm:$0xff]
    %v1903 = vld [vmem:[%s1890 + $0x60] sm:$0xff]
    %v1904 = vld [vmem:[%s1890 + $0x68] sm:$0xff]
    %v1905 = vld [vmem:[%s1890 + $0x70] sm:$0xff]
    %v1906 = vld [vmem:[%s1890 + $0x78] sm:$0xff]
    %v1907 = vld [vmem:[%s1890 + $0x80] sm:$0xff]
    %v1908 = vld [vmem:[%s1890 + $0x88] sm:$0xff]
    %v1909 = vld [vmem:[%s1890 + $0x90] sm:$0xff]
    %v1910 = vld [vmem:[%s1890 + $0x98] sm:$0xff]
    %v1911 = vld [vmem:[%s1890 + $0xa0] sm:$0xff]
    %v1912 = vld [vmem:[%s1890 + $0xa8] sm:$0xff]
    %v1913 = vld [vmem:[%s1890 + $0xb0] sm:$0xff]
    %v1914 = vld [vmem:[%s1890 + $0xb8] sm:$0xff]
    %v1915 = vld [vmem:[%s1890 + $0xc0] sm:$0xff]
    %v1916 = vld [vmem:[%s1890 + $0xc8] sm:$0xff]
    %v1917 = vld [vmem:[%s1890 + $0xd0] sm:$0xff]
    %v1918 = vld [vmem:[%s1890 + $0xd8] sm:$0xff]
    %v1919 = vld [vmem:[%s1890 + $0xe0] sm:$0xff]
    %v1920 = vld [vmem:[%s1890 + $0xe8] sm:$0xff]
    %v1921 = vld [vmem:[%s1890 + $0xf0] sm:$0xff]
    %v1922 = vld [vmem:[%s1890 + $0xf8] sm:$0xff]
    %1923 = vmatprep.subr.mxu0 %v1892
    %1924 = vmatpush1.msra.mxu0 %v1891
    %1925 = vmatprep.subr.mxu0 %v1894
    %1926 = vmatpush1.msra.mxu0 %v1893
    %1927 = vmatprep.subr.mxu0 %v1896
    %1928 = vmatpush1.msra.mxu0 %v1895
    %1929 = vmatprep.subr.mxu0 %v1898
    %1930 = vmatpush1.msra.mxu0 %v1897
    %1931 = vmatprep.subr.mxu0 %v1900
    %1932 = vmatpush1.msra.mxu0 %v1899
    %1933 = vmatprep.subr.mxu0 %v1902
    %1934 = vmatpush1.msra.mxu0 %v1901
    %1935 = vmatprep.subr.mxu0 %v1904
    %1936 = vmatpush1.msra.mxu0 %v1903
    %1937 = vmatprep.subr.mxu0 %v1906
    %1938 = vmatpush1.msra.mxu0 %v1905
    %1939 = vmatprep.subr.mxu0 %v1908
    %1940 = vmatpush1.msra.mxu0 %v1907
    %1941 = vmatprep.subr.mxu0 %v1910
    %1942 = vmatpush1.msra.mxu0 %v1909
    %1943 = vmatprep.subr.mxu0 %v1912
    %1944 = vmatpush1.msra.mxu0 %v1911
    %1945 = vmatprep.subr.mxu0 %v1914
    %1946 = vmatpush1.msra.mxu0 %v1913
    %1947 = vmatprep.subr.mxu0 %v1916
    %1948 = vmatpush1.msra.mxu0 %v1915
    %1949 = vmatprep.subr.mxu0 %v1918
    %1950 = vmatpush1.msra.mxu0 %v1917
    %1951 = vmatprep.subr.mxu0 %v1920
    %1952 = vmatpush1.msra.mxu0 %v1919
    %1953 = vmatprep.subr.mxu0 %v1922
    %1954 = vmatpush1.msra.mxu0 %v1921
    %1955 = vmatprep.subr.mxu0 0.0
    %1956 = vmatpush1.msra.mxu0 0.0
    %1957 = vmatprep.subr.mxu0 0.0
    %1958 = vmatpush1.msra.mxu0 0.0
    %1959 = vmatprep.subr.mxu0 0.0
    %1960 = vmatpush1.msra.mxu0 0.0
    %1961 = vmatprep.subr.mxu0 0.0
    %1962 = vmatpush1.msra.mxu0 0.0
    %1963 = vmatprep.subr.mxu0 0.0
    %1964 = vmatpush1.msra.mxu0 0.0
    %1965 = vmatprep.subr.mxu0 0.0
    %1966 = vmatpush1.msra.mxu0 0.0
    %1967 = vmatprep.subr.mxu0 0.0
    %1968 = vmatpush1.msra.mxu0 0.0
    %1969 = vmatprep.subr.mxu0 0.0
    %1970 = vmatpush1.msra.mxu0 0.0
    %1971 = vmatprep.subr.mxu0 0.0
    %1972 = vmatpush1.msra.mxu0 0.0
    %1973 = vmatprep.subr.mxu0 0.0
    %1974 = vmatpush1.msra.mxu0 0.0
    %1975 = vmatprep.subr.mxu0 0.0
    %1976 = vmatpush1.msra.mxu0 0.0
    %1977 = vmatprep.subr.mxu0 0.0
    %1978 = vmatpush1.msra.mxu0 0.0
    %1979 = vmatprep.subr.mxu0 0.0
    %1980 = vmatpush1.msra.mxu0 0.0
    %1981 = vmatprep.subr.mxu0 0.0
    %1982 = vmatpush1.msra.mxu0 0.0
    %1983 = vmatprep.subr.mxu0 0.0
    %1984 = vmatpush1.msra.mxu0 0.0
    %1985 = vmatprep.subr.mxu0 0.0
    %1986 = vmatpush1.msra.mxu0 0.0
    %1987 = vmatprep.mubr.f32.mxu0 0.0
    %1988 = vmatmul.mubr.f32.gmra.mrb[0].mxu0 %v1886
    %v1989 = vpop.f32.mrb[0].mxu0
    %v1990 = vadd.f32 0.0, %v1989
    %v1991 = vpop.f32.mrb[0].mxu0
    %v1992 = vadd.f32 0.0, %v1991
    %1993 = vmatprep.mubr.f32.mxu0 0.0
    %1994 = vmatmul.mubr.f32.gmra.mrb[0].mxu0 %v1887
    %v1995 = vpop.f32.mrb[0].mxu0
    %v1996 = vadd.f32 0.0, %v1995
    %v1997 = vpop.f32.mrb[0].mxu0
    %v1998 = vadd.f32 0.0, %v1997
    %1999 = vmatprep.mubr.f32.mxu0 0.0
    %2000 = vmatmul.mubr.f32.gmra.mrb[0].mxu0 %v1888
    %v2001 = vpop.f32.mrb[0].mxu0
    %v2002 = vadd.f32 0.0, %v2001
    %v2003 = vpop.f32.mrb[0].mxu0
    %v2004 = vadd.f32 0.0, %v2003
    %2005 = vmatprep.mubr.f32.mxu0 0.0
    %2006 = vmatmul.mubr.f32.gmra.mrb[0].mxu0 %v1889
    %v2007 = vpop.f32.mrb[0].mxu0
    %v2008 = vadd.f32 0.0, %v2007
    %v2009 = vpop.f32.mrb[0].mxu0
    %v2010 = vadd.f32 0.0, %v2009
    %2011 = vdwg.mxu0
    %v2012 = vadd.f32 %v1878, %v1990
    %v2013 = vadd.f32 %v1879, %v1992
    %v2014 = vadd.f32 %v1880, %v1996
    %v2015 = vadd.f32 %v1881, %v1998
    %v2016 = vadd.f32 %v1882, %v2002
    %v2017 = vadd.f32 %v1883, %v2004
    %v2018 = vadd.f32 %v1884, %v2008
    %v2019 = vadd.f32 %v1885, %v2010
    %v2020 = vld [vmem:[%s6] sm:$0x3]
    %v2022 = vlaneseq
    %v2023 = vshrl.u32 %v2022, 7
    %v2024 = vsub.s32 0, %v2023
    %v2025 = vrot.slane %v2020, %v2024
    %v2026 = vlaneseq
    %v2027 = vshrl.u32 %v2026, 7
    %v2028 = vsub.s32 1, %v2027
    %v2029 = vrot.slane %v2020, %v2028
    %v2032 = vadd.f32 %v2012, %v2025
    %v2033 = vadd.f32 %v2013, %v2029
    %v2034 = vadd.f32 %v2014, %v2025
    %v2035 = vadd.f32 %v2015, %v2029
    %v2036 = vadd.f32 %v2016, %v2025
    %v2037 = vadd.f32 %v2017, %v2029
    %v2038 = vadd.f32 %v2018, %v2025
    %v2039 = vadd.f32 %v2019, %v2029
    %v2040 = vmax.f32 %v2032, 0.0
    %v2041 = vmax.f32 %v2033, 0.0
    %v2042 = vmax.f32 %v2034, 0.0
    %v2043 = vmax.f32 %v2035, 0.0
    %v2044 = vmax.f32 %v2036, 0.0
    %v2045 = vmax.f32 %v2037, 0.0
    %v2046 = vmax.f32 %v2038, 0.0
    %v2047 = vmax.f32 %v2039, 0.0
    %2048 = vst [vmem:[#allocation13] sm:$0xff] %v914
    %2049 = vst [vmem:[#allocation13 + $0x8] sm:$0xff] %v915
    %2050 = vst [vmem:[#allocation13 + $0x10] sm:$0xff] %v1351
    %2051 = vst [vmem:[#allocation13 + $0x18] sm:$0xff] %v1352
    %2052 = vst [vmem:[#allocation13 + $0x20] sm:$0xff] %v2040
    %2053 = vst [vmem:[#allocation13 + $0x28] sm:$0xff] %v2041
    %2054 = vst [vmem:[#allocation13 + $0x30] sm:$0xff] %v918
    %2055 = vst [vmem:[#allocation13 + $0x38] sm:$0xff] %v919
    %2056 = vst [vmem:[#allocation13 + $0x40] sm:$0xff] %v920
    %2057 = vst [vmem:[#allocation13 + $0x48] sm:$0xff] %v921
    %2058 = vst [vmem:[#allocation13 + $0x50] sm:$0xff] %v1353
    %2059 = vst [vmem:[#allocation13 + $0x58] sm:$0xff] %v1354
    %2060 = vst [vmem:[#allocation13 + $0x60] sm:$0xff] %v2042
    %2061 = vst [vmem:[#allocation13 + $0x68] sm:$0xff] %v2043
    %2062 = vst [vmem:[#allocation13 + $0x70] sm:$0xff] %v924
    %2063 = vst [vmem:[#allocation13 + $0x78] sm:$0xff] %v925
    %2064 = vst [vmem:[#allocation13 + $0x80] sm:$0xff] %v926
    %2065 = vst [vmem:[#allocation13 + $0x88] sm:$0xff] %v927
    %2066 = vst [vmem:[#allocation13 + $0x90] sm:$0xff] %v1355
    %2067 = vst [vmem:[#allocation13 + $0x98] sm:$0xff] %v1356
    %2068 = vst [vmem:[#allocation13 + $0xa0] sm:$0xff] %v2044
    %2069 = vst [vmem:[#allocation13 + $0xa8] sm:$0xff] %v2045
    %2070 = vst [vmem:[#allocation13 + $0xb0] sm:$0xff] %v930
    %2071 = vst [vmem:[#allocation13 + $0xb8] sm:$0xff] %v931
    %2072 = vst [vmem:[#allocation13 + $0xc0] sm:$0xff] %v932
    %2073 = vst [vmem:[#allocation13 + $0xc8] sm:$0xff] %v933
    %2074 = vst [vmem:[#allocation13 + $0xd0] sm:$0xff] %v1357
    %2075 = vst [vmem:[#allocation13 + $0xd8] sm:$0xff] %v1358
    %2076 = vst [vmem:[#allocation13 + $0xe0] sm:$0xff] %v2046
    %2077 = vst [vmem:[#allocation13 + $0xe8] sm:$0xff] %v2047
    %2078 = vst [vmem:[#allocation13 + $0xf0] sm:$0xff] %v936
    %2079 = vst [vmem:[#allocation13 + $0xf8] sm:$0xff] %v937
    // Predicated region
    $region46: #{tpu_custom_call.1} parent=1 // pred_check
      _
    $region47: #{tpu_custom_call.1} parent=1 // pred_check_branch
      %2081 = sbr.rel (0) target = $region49
    $region48: #{tpu_custom_call.1} parent=1 // pred_region
      %s2083 = ssub.s32 4096, 4096
      %2084 = vsyncadd [#allocation7], %s2083
      %s2085 = sshll.u32 [#allocation13], 4
      %s2086 = int_to_ptr.vmem [resolvable:$true] %s2085
      %2091 = dma.vmem_to_hbm [thread:$0]  %s2086, 4096, %s7, [#allocation7], 1024, 1024, 64
    $region49: #{tpu_custom_call.1} parent=1 // pred_fallthru
      _
    // Predicated region
    $region50: #{tpu_custom_call.1} parent=1 // pred_check
      _
    $region51: #{tpu_custom_call.1} parent=1 // pred_check_branch
      %2093 = sbr.rel (0) target = $region53
    $region52: #{tpu_custom_call.1} parent=1 // pred_region
      %2094 = dma.done [#allocation7], 4096
    $region53: #{tpu_custom_call.1} parent=1 // pred_fallthru
      _
    %2095 = vsyncpa [#allocation6], 1
    %2096 = vsyncpa [#allocation9], 1
    %2097 = vsyncpa [#allocation12], 1
    %2098 = vsyncpa [#allocation7], 1

</llo_original>
